<compile_context>
chip_gen: v7x
topology: tpu7x:2x2x1
jax: 0.10.0
libtpu: 0.0.40
codegen_flags: <defaults>
</compile_context>

<pallas_src>
import functools

import jax
import jax.numpy as jnp
from jax.experimental import pallas as pl
from jax.experimental.pallas import tpu as pltpu


# ----------------------------------------------------------------------------
# In-kernel im2col (VMEM only, no HBM expansion)
# ----------------------------------------------------------------------------
def _im2col_cols(xp, kernel_size, dilation, ho, wo):
    """xp: (Hp, Wp, C) value -> (ho*wo, kernel_size**2 * C); tap-major, channel-minor."""
    c = xp.shape[-1]
    patches = []
    for kh in range(kernel_size):
        for kw in range(kernel_size):
            h0, w0 = kh * dilation, kw * dilation
            patches.append(xp[h0:h0 + ho, w0:w0 + wo, :])
    cols = jnp.concatenate(patches, axis=-1)          # (ho, wo, taps*C)
    return cols.reshape(ho * wo, kernel_size * kernel_size * c)


# ----------------------------------------------------------------------------
# Pallas kernels (one sample per grid step)
# ----------------------------------------------------------------------------
def conv_relu_bn_kernel(xp_ref, w_ref, b_ref, scale_ref, shift_ref, o_ref, *,
                        kernel_size, dilation, ho, wo):
    """conv (single K = taps*Cin matmul) + bias + ReLU + BN affine.

    xp_ref : (1, Hp, Wp, Cin)  spatially padded NHWC sample (bf16)
    w_ref  : (taps*Cin, Cp)    bf16
    b/scale/shift : (1, Cp)    f32
    o_ref  : (1, ho*wo, Cp)    f32, lane-dense
    """
    cols = _im2col_cols(xp_ref[0], kernel_size, dilation, ho, wo)
    acc = jnp.dot(cols, w_ref[...], preferred_element_type=jnp.float32)
    y = jnp.maximum(acc + b_ref[...], 0.0)
    o_ref[0] = y * scale_ref[...] + shift_ref[...]


def conv_se_relu_bn_kernel(xp_ref, w_ref, b_ref, fc1w_ref, fc1b_ref,
                           fc2w_ref, fc2b_ref, scale_ref, shift_ref, o_ref, *,
                           kernel_size, dilation, ho, wo):
    """conv2 + channel squeeze-excitation + ReLU + BN affine (one sample).

    xp_ref : (1, Hp, Wp, Cp)   padded stage-1 output (bf16)
    w_ref  : (taps*Cp, Cp)     bf16
    fc1w   : (Cp, Crp)  fc1b: (1, Crp)   fc2w: (Crp, Cp)  fc2b: (1, Cp)   f32
    o_ref  : (1, ho*wo, Cp)    f32
    """
    cols = _im2col_cols(xp_ref[0], kernel_size, dilation, ho, wo)
    z = jnp.dot(cols, w_ref[...], preferred_element_type=jnp.float32) + b_ref[...]

    # --- squeeze: per-sample spatial mean (XLU reduction; no pool matmul) ---
    s = jnp.mean(z, axis=0, keepdims=True)                                  # (1, Cp)
    h = jnp.maximum(
        jnp.dot(s, fc1w_ref[...], preferred_element_type=jnp.float32)
        + fc1b_ref[...], 0.0)                                               # (1, Crp)
    e = jax.nn.sigmoid(
        jnp.dot(h, fc2w_ref[...], preferred_element_type=jnp.float32)
        + fc2b_ref[...])                                                    # (1, Cp)

    # --- excite (gate broadcast over rows) + ReLU + BN affine ---
    y = jnp.maximum(z * e, 0.0)
    o_ref[0] = y * scale_ref[...] + shift_ref[...]


# ----------------------------------------------------------------------------
# Parameter / layout plumbing
# ----------------------------------------------------------------------------
def _round_up(x, m):
    return (x + m - 1) // m * m


def _out_size(s, kernel_size, padding, dilation):
    return s + 2 * padding - dilation * (kernel_size - 1)


def _conv_weight_matrix(w_oihw, cin_pad, cout_pad):
    """torch (Cout, Cin, KH, KW) -> (KH*KW*cin_pad, cout_pad), tap-major rows."""
    cout, cin, kh, kw = w_oihw.shape
    wt = jnp.transpose(w_oihw, (2, 3, 1, 0))          # (KH, KW, Cin, Cout)
    wt = jnp.pad(wt, ((0, 0), (0, 0), (0, cin_pad - cin), (0, cout_pad - cout)))
    return wt.reshape(kh * kw * cin_pad, cout_pad)


def _bn_fold(gamma, beta, mean, var, cpad, eps=1e-5):
    scale = gamma / jnp.sqrt(var + eps)
    shift = beta - mean * scale
    scale = jnp.pad(scale, (0, cpad - scale.shape[0]))   # padded channels -> 0
    shift = jnp.pad(shift, (0, cpad - shift.shape[0]))
    return scale[None, :], shift[None, :]


def _pad_vec(v, cpad):
    return jnp.pad(v, (0, cpad - v.shape[0]))[None, :]


def conv_block_forward(x_nchw, params, *, kernel_size, padding, dilation=1):
    n, cin, h, w = x_nchw.shape
    cout = params["conv1_w"].shape[0]
    cred = params["fc1_w"].shape[0]
    cp = _round_up(cout, 128)          # lane-dense channel width
    crp = _round_up(cred, 128)
    ho1 = _out_size(h, kernel_size, padding, dilation)
    wo1 = _out_size(w, kernel_size, padding, dilation)
    ho2 = _out_size(ho1, kernel_size, padding, dilation)
    wo2 = _out_size(wo1, kernel_size, padding, dilation)

    # ---- parameters: pad to lane-dense widths once, cast matmul operands to bf16 ----
    w1 = _conv_weight_matrix(params["conv1_w"], cin, cp).astype(jnp.bfloat16)
    b1 = _pad_vec(params["conv1_b"], cp).astype(jnp.float32)
    scale1, shift1 = _bn_fold(*params["bn1"], cp)
    w2 = _conv_weight_matrix(params["conv2_w"], cp, cp).astype(jnp.bfloat16)
    b2 = _pad_vec(params["conv2_b"], cp).astype(jnp.float32)
    scale2, shift2 = _bn_fold(*params["bn2"], cp)
    fc1w = jnp.pad(params["fc1_w"].T, ((0, cp - cout), (0, crp - cred)))
    fc1b = _pad_vec(params["fc1_b"], crp)
    fc2w = jnp.pad(params["fc2_w"].T, ((0, crp - cred), (0, cp - cout)))
    fc2b = _pad_vec(params["fc2_b"], cp)

    cparams = pltpu.CompilerParams(
        dimension_semantics=("parallel",),        # samples are independent tiles
        vmem_limit_bytes=32 * 1024 * 1024)        # explicit, fits v7x's 64 MiB VMEM

    def full(shape):
        nd = len(shape)
        return pl.BlockSpec(shape, lambda i, _nd=nd: (0,) * _nd)

    # ---- stage 1: conv1 -> ReLU -> BN1 ----
    x_nhwc = jnp.transpose(x_nchw, (0, 2, 3, 1)).astype(jnp.float32)
    xp1 = jnp.pad(x_nhwc, ((0, 0), (padding, padding), (padding, padding),
                           (0, 0))).astype(jnp.bfloat16)
    hp1, wp1 = xp1.shape[1], xp1.shape[2]
    k1 = functools.partial(conv_relu_bn_kernel, kernel_size=kernel_size,
                           dilation=dilation, ho=ho1, wo=wo1)
    y1 = pl.pallas_call(
        k1,
        out_shape=jax.ShapeDtypeStruct((n, ho1 * wo1, cp), jnp.float32),
        grid=(n,),
        in_specs=[pl.BlockSpec((1, hp1, wp1, cin), lambda i: (i, 0, 0, 0)),
                  full(w1.shape), full(b1.shape),
                  full(scale1.shape), full(shift1.shape)],
        out_specs=pl.BlockSpec((1, ho1 * wo1, cp), lambda i: (i, 0, 0)),
        compiler_params=cparams,
    )(xp1, w1, b1, scale1, shift1)

    # ---- stage 2: conv2 -> ChannelSE -> ReLU -> BN2 ----
    xp2 = jnp.pad(y1.reshape(n, ho1, wo1, cp),
                  ((0, 0), (padding, padding), (padding, padding),
                   (0, 0))).astype(jnp.bfloat16)
    hp2, wp2 = xp2.shape[1], xp2.shape[2]
    k2 = functools.partial(conv_se_relu_bn_kernel, kernel_size=kernel_size,
                           dilation=dilation, ho=ho2, wo=wo2)
    y2 = pl.pallas_call(
        k2,
        out_shape=jax.ShapeDtypeStruct((n, ho2 * wo2, cp), jnp.float32),
        grid=(n,),
        in_specs=[pl.BlockSpec((1, hp2, wp2, cp), lambda i: (i, 0, 0, 0)),
                  full(w2.shape), full(b2.shape),
                  full(fc1w.shape), full(fc1b.shape),
                  full(fc2w.shape), full(fc2b.shape),
                  full(scale2.shape), full(shift2.shape)],
        out_specs=pl.BlockSpec((1, ho2 * wo2, cp), lambda i: (i, 0, 0)),
        compiler_params=cparams,
    )(xp2, w2, b2, fc1w, fc1b, fc2w, fc2b, scale2, shift2)

    out = y2.reshape(n, ho2, wo2, cp)[..., :cout]
    return jnp.transpose(out, (0, 3, 1, 2))                       # back to NCHW


# ----------------------------------------------------------------------------
# Pure-JAX f32 reference (sanity check)
# ----------------------------------------------------------------------------
def reference_forward(x, params, *, kernel_size, padding, dilation=1):
    del kernel_size

    def conv(x, w, b):
        y = jax.lax.conv_general_dilated(
            x, w, window_strides=(1, 1),
            padding=[(padding, padding), (padding, padding)],
            rhs_dilation=(dilation, dilation),
            dimension_numbers=("NCHW", "OIHW", "NCHW"))
        return y + b[None, :, None, None]

    def bn(x, gamma, beta, mean, var, eps=1e-5):
        return ((x - mean[None, :, None, None])
                / jnp.sqrt(var[None, :, None, None] + eps)
                * gamma[None, :, None, None] + beta[None, :, None, None])

    y = conv(x, params["conv1_w"], params["conv1_b"])
    y = jnp.maximum(y, 0.0)
    y = bn(y, *params["bn1"])
    z = conv(y, params["conv2_w"], params["conv2_b"])
    s = jnp.mean(z, axis=(2, 3))
    hh = jnp.maximum(s @ params["fc1_w"].T + params["fc1_b"], 0.0)
    e = jax.nn.sigmoid(hh @ params["fc2_w"].T + params["fc2_b"])
    z = z * e[:, :, None, None]
    z = jnp.maximum(z, 0.0)
    return bn(z, *params["bn2"])


# ----------------------------------------------------------------------------
# Main
# ----------------------------------------------------------------------------
if __name__ == "__main__":
    N, CIN, COUT, H, W = 2, 4, 8, 16, 16
    K, PAD, DIL = 3, 1, 1
    CRED = COUT // 2

    keys = jax.random.split(jax.random.PRNGKey(0), 16)
    nrm = jax.random.normal

    params = {
        "conv1_w": 0.1 * nrm(keys[0], (COUT, CIN, K, K), jnp.float32),
        "conv1_b": 0.1 * nrm(keys[1], (COUT,), jnp.float32),
        "bn1": (1.0 + 0.1 * nrm(keys[2], (COUT,), jnp.float32),            # gamma
                0.1 * nrm(keys[3], (COUT,), jnp.float32),                  # beta
                0.05 * nrm(keys[4], (COUT,), jnp.float32),                 # running_mean
                1.0 + 0.1 * jnp.abs(nrm(keys[5], (COUT,), jnp.float32))),  # running_var
        "conv2_w": 0.1 * nrm(keys[6], (COUT, COUT, K, K), jnp.float32),
        "conv2_b": 0.1 * nrm(keys[7], (COUT,), jnp.float32),
        "fc1_w": 0.3 * nrm(keys[8], (CRED, COUT), jnp.float32),
        "fc1_b": 0.1 * nrm(keys[9], (CRED,), jnp.float32),
        "fc2_w": 0.3 * nrm(keys[10], (COUT, CRED), jnp.float32),
        "fc2_b": 0.1 * nrm(keys[11], (COUT,), jnp.float32),
        "bn2": (1.0 + 0.1 * nrm(keys[12], (COUT,), jnp.float32),
                0.1 * nrm(keys[13], (COUT,), jnp.float32),
                0.05 * nrm(keys[14], (COUT,), jnp.float32),
                1.0 + 0.1 * jnp.abs(nrm(keys[15], (COUT,), jnp.float32))),
    }

    x = jax.random.normal(jax.random.PRNGKey(42), (N, CIN, H, W), jnp.float32)

    out = jax.block_until_ready(
        conv_block_forward(x, params, kernel_size=K, padding=PAD, dilation=DIL))
    assert out.shape == (N, COUT, H, W), out.shape

    ref = reference_forward(x, params, kernel_size=K, padding=PAD, dilation=DIL)
    max_err = float(jnp.max(jnp.abs(out - ref)))
    # bf16 matmul operands (f32 accumulation) -> slightly looser tolerance than pure f32.
    assert max_err < 5e-2, f"mismatch vs reference: max abs err {max_err}"

    print("KERNEL_OK")
</pallas_src>

<mosaic_0001>
module attributes {stable_mosaic.version = 11 : i64} {
  func.func @conv_relu_bn_kernel(%arg0: i32, %arg1: memref<1x18x18x4xbf16, #tpu.memory_space<vmem>>, %arg2: memref<36x128xbf16, #tpu.memory_space<vmem>>, %arg3: memref<1x128xf32, #tpu.memory_space<vmem>>, %arg4: memref<1x128xf32, #tpu.memory_space<vmem>>, %arg5: memref<1x128xf32, #tpu.memory_space<vmem>>, %arg6: memref<1x256x128xf32, #tpu.memory_space<vmem>>) attributes {dimension_semantics = [#tpu.dimension_semantics<parallel>], iteration_bounds = array<i64: 2>, scalar_prefetch = 0 : i64, scratch_operands = 0 : i64, tpu.core_type = #tpu.core_type<tc>, window_params = [{transform_indices = @transform_0, window_bounds = array<i64: 1, 18, 18, 4>}, {pipeline_mode = #tpu.pipeline_mode<synchronous>, transform_indices = @transform_1, window_bounds = array<i64: 36, 128>}, {pipeline_mode = #tpu.pipeline_mode<synchronous>, transform_indices = @transform_2, window_bounds = array<i64: 1, 128>}, {pipeline_mode = #tpu.pipeline_mode<synchronous>, transform_indices = @transform_3, window_bounds = array<i64: 1, 128>}, {pipeline_mode = #tpu.pipeline_mode<synchronous>, transform_indices = @transform_4, window_bounds = array<i64: 1, 128>}, {transform_indices = @transform_5, window_bounds = array<i64: 1, 256, 128>}]} {
    %c0 = arith.constant 0 : index
    %c0_0 = arith.constant 0 : index
    %c0_1 = arith.constant 0 : index
    %c0_2 = arith.constant 0 : index
    %0 = vector.load %arg1[%c0, %c0_0, %c0_1, %c0_2] : memref<1x18x18x4xbf16, #tpu.memory_space<vmem>>, vector<1x18x18x4xbf16>
    %1 = vector.shape_cast %0 : vector<1x18x18x4xbf16> to vector<18x18x4xbf16>
    %2 = vector.extract_strided_slice %1 {offsets = [0, 0, 0], sizes = [16, 16, 4], strides = [1, 1, 1]} : vector<18x18x4xbf16> to vector<16x16x4xbf16>
    %3 = vector.extract_strided_slice %1 {offsets = [0, 1, 0], sizes = [16, 16, 4], strides = [1, 1, 1]} : vector<18x18x4xbf16> to vector<16x16x4xbf16>
    %4 = vector.extract_strided_slice %1 {offsets = [0, 2, 0], sizes = [16, 16, 4], strides = [1, 1, 1]} : vector<18x18x4xbf16> to vector<16x16x4xbf16>
    %5 = vector.extract_strided_slice %1 {offsets = [1, 0, 0], sizes = [16, 16, 4], strides = [1, 1, 1]} : vector<18x18x4xbf16> to vector<16x16x4xbf16>
    %6 = vector.extract_strided_slice %1 {offsets = [1, 1, 0], sizes = [16, 16, 4], strides = [1, 1, 1]} : vector<18x18x4xbf16> to vector<16x16x4xbf16>
    %7 = vector.extract_strided_slice %1 {offsets = [1, 2, 0], sizes = [16, 16, 4], strides = [1, 1, 1]} : vector<18x18x4xbf16> to vector<16x16x4xbf16>
    %8 = vector.extract_strided_slice %1 {offsets = [2, 0, 0], sizes = [16, 16, 4], strides = [1, 1, 1]} : vector<18x18x4xbf16> to vector<16x16x4xbf16>
    %9 = vector.extract_strided_slice %1 {offsets = [2, 1, 0], sizes = [16, 16, 4], strides = [1, 1, 1]} : vector<18x18x4xbf16> to vector<16x16x4xbf16>
    %10 = vector.extract_strided_slice %1 {offsets = [2, 2, 0], sizes = [16, 16, 4], strides = [1, 1, 1]} : vector<18x18x4xbf16> to vector<16x16x4xbf16>
    %11 = tpu.concatenate %2, %3, %4, %5, %6, %7, %8, %9, %10 in 2 : vector<16x16x4xbf16>, vector<16x16x4xbf16>, vector<16x16x4xbf16>, vector<16x16x4xbf16>, vector<16x16x4xbf16>, vector<16x16x4xbf16>, vector<16x16x4xbf16>, vector<16x16x4xbf16>, vector<16x16x4xbf16> -> vector<16x16x36xbf16>
    %12 = vector.shape_cast %11 : vector<16x16x36xbf16> to vector<256x36xbf16>
    %c0_3 = arith.constant 0 : index
    %c0_4 = arith.constant 0 : index
    %13 = vector.load %arg2[%c0_3, %c0_4] : memref<36x128xbf16, #tpu.memory_space<vmem>>, vector<36x128xbf16>
    %cst = arith.constant dense<0.000000e+00> : vector<256x128xf32>
    %14 = tpu.matmul %12, %13, %cst {dimension_numbers = #tpu.dot_dimension_numbers<[1], [0], [0], [1], [0, 0, 1, 1], [], []>} : vector<256x36xbf16>, vector<36x128xbf16>, vector<256x128xf32> -> vector<256x128xf32>
    %c0_5 = arith.constant 0 : index
    %c0_6 = arith.constant 0 : index
    %15 = vector.load %arg3[%c0_5, %c0_6] : memref<1x128xf32, #tpu.memory_space<vmem>>, vector<1x128xf32>
    %16 = vector.broadcast %15 : vector<1x128xf32> to vector<256x128xf32>
    %17 = arith.addf %14, %16 : vector<256x128xf32>
    %cst_7 = arith.constant 0.000000e+00 : f32
    %18 = vector.broadcast %cst_7 : f32 to vector<256x128xf32>
    %19 = arith.maximumf %17, %18 : vector<256x128xf32>
    %c0_8 = arith.constant 0 : index
    %c0_9 = arith.constant 0 : index
    %20 = vector.load %arg4[%c0_8, %c0_9] : memref<1x128xf32, #tpu.memory_space<vmem>>, vector<1x128xf32>
    %21 = vector.broadcast %20 : vector<1x128xf32> to vector<256x128xf32>
    %22 = arith.mulf %19, %21 : vector<256x128xf32>
    %c0_10 = arith.constant 0 : index
    %c0_11 = arith.constant 0 : index
    %23 = vector.load %arg5[%c0_10, %c0_11] : memref<1x128xf32, #tpu.memory_space<vmem>>, vector<1x128xf32>
    %24 = vector.broadcast %23 : vector<1x128xf32> to vector<256x128xf32>
    %25 = arith.addf %22, %24 : vector<256x128xf32>
    %c0_12 = arith.constant 0 : index
    %c0_13 = arith.constant 0 : index
    %c0_14 = arith.constant 0 : index
    %26 = vector.load %arg6[%c0_12, %c0_13, %c0_14] : memref<1x256x128xf32, #tpu.memory_space<vmem>>, vector<1x256x128xf32>
    %27 = vector.shape_cast %26 : vector<1x256x128xf32> to vector<256x128xf32>
    %28 = vector.shape_cast %25 : vector<256x128xf32> to vector<1x256x128xf32>
    tpu.vector_store %arg6[%c0_12, %c0_13, %c0_14], %28 {strides = array<i32>} : memref<1x256x128xf32, #tpu.memory_space<vmem>>, vector<1x256x128xf32>,
    return
  }
  func.func @transform_0(%arg0: i32) -> (i32, i32, i32, i32) {
    %c0_i32 = arith.constant 0 : i32
    %c0_i32_0 = arith.constant 0 : i32
    %c0_i32_1 = arith.constant 0 : i32
    %c0_i32_2 = arith.constant 0 : i32
    return %arg0, %c0_i32, %c0_i32_0, %c0_i32_1 : i32, i32, i32, i32
  }
  func.func @transform_1(%arg0: i32) -> (i32, i32) {
    %c0_i32 = arith.constant 0 : i32
    %c0_i32_0 = arith.constant 0 : i32
    %c0_i32_1 = arith.constant 0 : i32
    return %c0_i32, %c0_i32_0 : i32, i32
  }
  func.func @transform_2(%arg0: i32) -> (i32, i32) {
    %c0_i32 = arith.constant 0 : i32
    %c0_i32_0 = arith.constant 0 : i32
    %c0_i32_1 = arith.constant 0 : i32
    return %c0_i32, %c0_i32_0 : i32, i32
  }
  func.func @transform_3(%arg0: i32) -> (i32, i32) {
    %c0_i32 = arith.constant 0 : i32
    %c0_i32_0 = arith.constant 0 : i32
    %c0_i32_1 = arith.constant 0 : i32
    return %c0_i32, %c0_i32_0 : i32, i32
  }
  func.func @transform_4(%arg0: i32) -> (i32, i32) {
    %c0_i32 = arith.constant 0 : i32
    %c0_i32_0 = arith.constant 0 : i32
    %c0_i32_1 = arith.constant 0 : i32
    return %c0_i32, %c0_i32_0 : i32, i32
  }
  func.func @transform_5(%arg0: i32) -> (i32, i32, i32) {
    %c0_i32 = arith.constant 0 : i32
    %c0_i32_0 = arith.constant 0 : i32
    %c0_i32_1 = arith.constant 0 : i32
    return %arg0, %c0_i32, %c0_i32_0 : i32, i32, i32
  }
}

</mosaic_0001>

<llo_original>
// kernel: tpu_custom_call.1
$region0: #{tpu_custom_call.1}
  #allocation0 [shape = 'u32[]', space=smem, size = 0x4, offset = 0x4, fixed_abs, tag = 'smem constant byte address 0x4 - core index']
  #allocation1 [shape = 'u32[144,128]{1,0:T(1,128)}', space=vmem, size = 0x12000, scoped, tag = 'internal scratch']
  %s0 = inlined_call_operand.vmem [shape: bf16[2,18,18,4], index: 0, kind: input, shape index: {}]
  %s1 = inlined_call_operand.vmem [shape: bf16[36,128], index: 1, kind: input, shape index: {}]
  %s2 = inlined_call_operand.vmem [shape: f32[1,128], index: 2, kind: input, shape index: {}]
  %s3 = inlined_call_operand.vmem [shape: f32[1,128], index: 3, kind: input, shape index: {}]
  %s4 = inlined_call_operand.vmem [shape: f32[1,128], index: 4, kind: input, shape index: {}]
  %s5 = inlined_call_operand.hbm [shape: f32[2,256,128], index: 5, kind: output, shape index: {}]
  %s6 = sld [smem:[#allocation0]]
  $region53: #{tpu_custom_call.1} parent=0
    _
  %s8 = ssub.s32 1, %s6
  %s9 = scalar_select 0, %s8, %s6
  $region1: #{tpu_custom_call.1} parent=0
    #allocation2 [shape = 'u8[262144]{0}', space=vmem, size = 0x40000, scoped, tag = 'output window, operand 0']
    #allocation3 [shape = 's32[2]{0}', space=sflag, size = 0x8, scoped, tag = 'scoped memory for tpu_custom_call.1']
    %10 = vsyncpa [#allocation3], 0
    %s11 = scalar_lea.sflag [#allocation3], 1
    %12 = vsyncpa %s11, 0
    loop: start=0, step=1, limit=4
    $region2: #{tpu_custom_call.1} parent=1 // loop_pre_header
      _
    $region3: #{tpu_custom_call.1} parent=1 // loop_header
      %s14 = sphi 0, %s18
      %p15 = scmp.ge.s32.totalorder %s14, 4
      %s24 = sphi 0, %s26
      %s27 = sphi 0, %s24
      %s28 = sphi 0, %s27
      %s44 = sphi 0, %s28
      %s48 = sphi 0, %s48
      %s50 = sphi 0, %s48
      %s51 = sphi 0, %s50
      %s65 = sphi 0, %s51
      %s69 = sphi 0, %s69
      %s71 = sphi 0, %s69
      %s72 = sphi 0, %s71
      %s86 = sphi 0, %s72
      %s90 = sphi 0, %s90
      %s92 = sphi 0, %s90
      %s93 = sphi 0, %s92
      %s107 = sphi 0, %s93
      %s111 = sphi 0, %s111
      %s113 = sphi 0, %s111
      %s114 = sphi 0, %s113
      %s128 = sphi 0, %s114
      %s134 = sphi 0, %s136
      %s137 = sphi 0, %s134
      %s138 = sphi 0, %s137
      %s154 = sphi 0, %s138
    $region4: #{tpu_custom_call.1} parent=1 // loop_header_branch
      %17 = sbr.rel (%p15) target = $region8
    $region5: #{tpu_custom_call.1} parent=1 // loop_body
      %s19 = ssub.s32 %s14, 1
      %s20 = ssub.s32 %s14, 2
      %s21 = sadd.s32 %s14, 1
      %s22 = ssub.s32 %s14, %s21
      %p23 = scmp.eq.s32.totalorder %s22, 0
      %s25 = sadd.s32 %s24, 1
      %s26 = scalar_select %p23, %s24, %s25
      %p29 = pneg %p23
      %p30 = scmp.eq.s32.totalorder %s14, 1
      %p31 = por %p29, %p30
      %p32 = scmp.ne.s32.totalorder %s24, %s27
      %p33 = scmp.eq.s32.totalorder %s14, 0
      %p34 = por %p32, %p33
      %p35 = scmp.ne.s32.totalorder %s24, %s27
      %p36 = scmp.eq.s32.totalorder %s19, 1
      %p37 = por %p35, %p36
      %p38 = scmp.ne.s32.totalorder %s27, %s28
      %p39 = scmp.eq.s32.totalorder %s19, 0
      %p40 = por %p38, %p39
      %p41 = scmp.ne.s32.totalorder %s27, %s28
      %p42 = scmp.eq.s32.totalorder %s20, 1
      %p43 = por %p41, %p42
      %p45 = scmp.ne.s32.totalorder %s28, %s44
      %p46 = scmp.eq.s32.totalorder %s20, 0
      %p47 = por %p45, %p46
      %s49 = sadd.s32 %s48, 1
      %p52 = scmp.eq.s32.totalorder %s14, 1
      %p53 = scmp.ne.s32.totalorder %s48, %s50
      %p54 = scmp.eq.s32.totalorder %s14, 0
      %p55 = por %p53, %p54
      %p56 = scmp.ne.s32.totalorder %s48, %s50
      %p57 = scmp.eq.s32.totalorder %s19, 1
      %p58 = por %p56, %p57
      %p59 = scmp.ne.s32.totalorder %s50, %s51
      %p60 = scmp.eq.s32.totalorder %s19, 0
      %p61 = por %p59, %p60
      %p62 = scmp.ne.s32.totalorder %s50, %s51
      %p63 = scmp.eq.s32.totalorder %s20, 1
      %p64 = por %p62, %p63
      %p66 = scmp.ne.s32.totalorder %s51, %s65
      %p67 = scmp.eq.s32.totalorder %s20, 0
      %p68 = por %p66, %p67
      %s70 = sadd.s32 %s69, 1
      %p73 = scmp.eq.s32.totalorder %s14, 1
      %p74 = scmp.ne.s32.totalorder %s69, %s71
      %p75 = scmp.eq.s32.totalorder %s14, 0
      %p76 = por %p74, %p75
      %p77 = scmp.ne.s32.totalorder %s69, %s71
      %p78 = scmp.eq.s32.totalorder %s19, 1
      %p79 = por %p77, %p78
      %p80 = scmp.ne.s32.totalorder %s71, %s72
      %p81 = scmp.eq.s32.totalorder %s19, 0
      %p82 = por %p80, %p81
      %p83 = scmp.ne.s32.totalorder %s71, %s72
      %p84 = scmp.eq.s32.totalorder %s20, 1
      %p85 = por %p83, %p84
      %p87 = scmp.ne.s32.totalorder %s72, %s86
      %p88 = scmp.eq.s32.totalorder %s20, 0
      %p89 = por %p87, %p88
      %s91 = sadd.s32 %s90, 1
      %p94 = scmp.eq.s32.totalorder %s14, 1
      %p95 = scmp.ne.s32.totalorder %s90, %s92
      %p96 = scmp.eq.s32.totalorder %s14, 0
      %p97 = por %p95, %p96
      %p98 = scmp.ne.s32.totalorder %s90, %s92
      %p99 = scmp.eq.s32.totalorder %s19, 1
      %p100 = por %p98, %p99
      %p101 = scmp.ne.s32.totalorder %s92, %s93
      %p102 = scmp.eq.s32.totalorder %s19, 0
      %p103 = por %p101, %p102
      %p104 = scmp.ne.s32.totalorder %s92, %s93
      %p105 = scmp.eq.s32.totalorder %s20, 1
      %p106 = por %p104, %p105
      %p108 = scmp.ne.s32.totalorder %s93, %s107
      %p109 = scmp.eq.s32.totalorder %s20, 0
      %p110 = por %p108, %p109
      %s112 = sadd.s32 %s111, 1
      %p115 = scmp.eq.s32.totalorder %s14, 1
      %p116 = scmp.ne.s32.totalorder %s111, %s113
      %p117 = scmp.eq.s32.totalorder %s14, 0
      %p118 = por %p116, %p117
      %p119 = scmp.ne.s32.totalorder %s111, %s113
      %p120 = scmp.eq.s32.totalorder %s19, 1
      %p121 = por %p119, %p120
      %p122 = scmp.ne.s32.totalorder %s113, %s114
      %p123 = scmp.eq.s32.totalorder %s19, 0
      %p124 = por %p122, %p123
      %p125 = scmp.ne.s32.totalorder %s113, %s114
      %p126 = scmp.eq.s32.totalorder %s20, 1
      %p127 = por %p125, %p126
      %p129 = scmp.ne.s32.totalorder %s114, %s128
      %p130 = scmp.eq.s32.totalorder %s20, 0
      %p131 = por %p129, %p130
      %s132 = ssub.s32 %s14, %s21
      %p133 = scmp.eq.s32.totalorder %s132, 0
      %s135 = sadd.s32 %s134, 1
      %s136 = scalar_select %p133, %s134, %s135
      %p139 = pneg %p133
      %p140 = scmp.eq.s32.totalorder %s14, 1
      %p141 = por %p139, %p140
      %p142 = scmp.ne.s32.totalorder %s134, %s137
      %p143 = scmp.eq.s32.totalorder %s14, 0
      %p144 = por %p142, %p143
      %p145 = scmp.ne.s32.totalorder %s134, %s137
      %p146 = scmp.eq.s32.totalorder %s19, 1
      %p147 = por %p145, %p146
      %p148 = scmp.ne.s32.totalorder %s137, %s138
      %p149 = scmp.eq.s32.totalorder %s19, 0
      %p150 = por %p148, %p149
      %p151 = scmp.ne.s32.totalorder %s137, %s138
      %p152 = scmp.eq.s32.totalorder %s20, 1
      %p153 = por %p151, %p152
      %p155 = scmp.ne.s32.totalorder %s138, %s154
      %p156 = scmp.eq.s32.totalorder %s20, 0
      %p157 = por %p155, %p156
      %p158 = scmp.le.s32.totalorder 1, %s14
      %p159 = scmp.lt.s32.totalorder %s14, 3
      %p160 = pnand %p158, %p159
      %p161 = pneg %p160
      // Predicated region
      $region9: #{tpu_custom_call.1} parent=5 // pred_check
        _
      $region10: #{tpu_custom_call.1} parent=5 // pred_check_branch
        %163 = sbr.rel (%p160) target = $region12
      $region11: #{tpu_custom_call.1} parent=5 // pred_region
        %s164 = ssub.s32 %s14, 1
        // Predicated region
        $region13: #{tpu_custom_call.1} parent=11 // pred_check
          %p165 = pneg %p61
        $region14: #{tpu_custom_call.1} parent=11 // pred_check_branch
          %167 = sbr.rel (%p165) target = $region16
        $region15: #{tpu_custom_call.1} parent=11 // pred_region
          _
        $region16: #{tpu_custom_call.1} parent=11 // pred_fallthru
          _
        // Predicated region
        $region17: #{tpu_custom_call.1} parent=11 // pred_check
          %p168 = pneg %p82
        $region18: #{tpu_custom_call.1} parent=11 // pred_check_branch
          %170 = sbr.rel (%p168) target = $region20
        $region19: #{tpu_custom_call.1} parent=11 // pred_region
          _
        $region20: #{tpu_custom_call.1} parent=11 // pred_fallthru
          _
        // Predicated region
        $region21: #{tpu_custom_call.1} parent=11 // pred_check
          %p171 = pneg %p103
        $region22: #{tpu_custom_call.1} parent=11 // pred_check_branch
          %173 = sbr.rel (%p171) target = $region24
        $region23: #{tpu_custom_call.1} parent=11 // pred_region
          _
        $region24: #{tpu_custom_call.1} parent=11 // pred_fallthru
          _
        // Predicated region
        $region25: #{tpu_custom_call.1} parent=11 // pred_check
          %p174 = pneg %p124
        $region26: #{tpu_custom_call.1} parent=11 // pred_check_branch
          %176 = sbr.rel (%p174) target = $region28
        $region27: #{tpu_custom_call.1} parent=11 // pred_region
          _
        $region28: #{tpu_custom_call.1} parent=11 // pred_fallthru
          _
      $region12: #{tpu_custom_call.1} parent=5 // pred_fallthru
        _
      %p177 = scmp.lt.s32.totalorder %s14, 2
      // Predicated region
      $region29: #{tpu_custom_call.1} parent=5 // pred_check
        %p178 = pneg %p177
      $region30: #{tpu_custom_call.1} parent=5 // pred_check_branch
        %180 = sbr.rel (%p178) target = $region32
      $region31: #{tpu_custom_call.1} parent=5 // pred_region
        // Predicated region
        $region33: #{tpu_custom_call.1} parent=31 // pred_check
          %p181 = pneg %p34
        $region34: #{tpu_custom_call.1} parent=31 // pred_check_branch
          %183 = sbr.rel (%p181) target = $region36
        $region35: #{tpu_custom_call.1} parent=31 // pred_region
          %p184 = scmp.lt.s32.totalorder %s14, 1
          %s185 = scalar_select %p184, %s14, 1
          %s186 = smul.addr %s185, 54
          %s187 = smul.addr %s186, 4
          %s188 = scalar_lea.vmem %s0, %s187
        $region36: #{tpu_custom_call.1} parent=31 // pred_fallthru
          _
      $region32: #{tpu_custom_call.1} parent=5 // pred_fallthru
        _
      %p189 = scmp.le.s32.totalorder 1, %s14
      %p190 = scmp.lt.s32.totalorder %s14, 3
      %p191 = pnand %p189, %p190
      %p192 = pneg %p191
      // Predicated region
      $region37: #{tpu_custom_call.1} parent=5 // pred_check
        _
      $region38: #{tpu_custom_call.1} parent=5 // pred_check_branch
        %194 = sbr.rel (%p191) target = $region40
      $region39: #{tpu_custom_call.1} parent=5 // pred_region
        %s195 = ssub.s32 %s14, 1
        %p196 = scmp.lt.s32.totalorder %s19, 1
        %s197 = scalar_select %p196, %s19, 1
        %s198 = smul.addr %s197, 54
        %s199 = smul.addr %s198, 4
        %s200 = scalar_lea.vmem %s0, %s199
        %p201 = pneg %p40
        %p202 = pneg %p37
        %p203 = pneg %p61
        %p204 = pneg %p58
        %p205 = pneg %p82
        %p206 = pneg %p79
        %p207 = pneg %p103
        %p208 = pneg %p100
        %p209 = pneg %p124
        %p210 = pneg %p121
        %p211 = pneg %p150
        %p212 = pneg %p147
        %s213 = sand.u32 %s137, 1
        %s214 = scalar_lea.sflag [#allocation3], %s213
        %s215 = sand.u32 %s137, 1
        %s216 = smul.addr %s215, 256
        %s217 = scalar_lea.vmem [#allocation2], %s216
        %p218 = scmp.lt.s32.totalorder %s19, 1
        %s219 = scalar_select %p218, %s19, 1
        %s220 = smul.addr %s219, 54
        %s221 = smul.addr %s220, 4
        %s222 = scalar_lea.vmem %s0, %s221
        %v224 = vld [vmem:[%s222] sm:$0xf]
        %v225 = vld [vmem:[%s222 + $0x4] sm:$0xf]
        %v226 = vld [vmem:[%s222 + $0x8] sm:$0x1]
        %v227 = vld [vmem:[%s222 + $0xc] sm:$0xf]
        %v228 = vld [vmem:[%s222 + $0x10] sm:$0xf]
        %v229 = vld [vmem:[%s222 + $0x14] sm:$0x1]
        %v230 = vld [vmem:[%s222 + $0x18] sm:$0xf]
        %v231 = vld [vmem:[%s222 + $0x1c] sm:$0xf]
        %v232 = vld [vmem:[%s222 + $0x20] sm:$0x1]
        %v233 = vld [vmem:[%s222 + $0x24] sm:$0xf]
        %v234 = vld [vmem:[%s222 + $0x28] sm:$0xf]
        %v235 = vld [vmem:[%s222 + $0x2c] sm:$0x1]
        %v236 = vld [vmem:[%s222 + $0x30] sm:$0xf]
        %v237 = vld [vmem:[%s222 + $0x34] sm:$0xf]
        %v238 = vld [vmem:[%s222 + $0x38] sm:$0x1]
        %v239 = vld [vmem:[%s222 + $0x3c] sm:$0xf]
        %v240 = vld [vmem:[%s222 + $0x40] sm:$0xf]
        %v241 = vld [vmem:[%s222 + $0x44] sm:$0x1]
        %v242 = vld [vmem:[%s222 + $0x48] sm:$0xf]
        %v243 = vld [vmem:[%s222 + $0x4c] sm:$0xf]
        %v244 = vld [vmem:[%s222 + $0x50] sm:$0x1]
        %v245 = vld [vmem:[%s222 + $0x54] sm:$0xf]
        %v246 = vld [vmem:[%s222 + $0x58] sm:$0xf]
        %v247 = vld [vmem:[%s222 + $0x5c] sm:$0x1]
        %v248 = vld [vmem:[%s222 + $0x60] sm:$0xf]
        %v249 = vld [vmem:[%s222 + $0x64] sm:$0xf]
        %v250 = vld [vmem:[%s222 + $0x68] sm:$0x1]
        %v251 = vld [vmem:[%s222 + $0x6c] sm:$0xf]
        %v252 = vld [vmem:[%s222 + $0x70] sm:$0xf]
        %v253 = vld [vmem:[%s222 + $0x74] sm:$0x1]
        %v254 = vld [vmem:[%s222 + $0x78] sm:$0xf]
        %v255 = vld [vmem:[%s222 + $0x7c] sm:$0xf]
        %v256 = vld [vmem:[%s222 + $0x80] sm:$0x1]
        %v257 = vld [vmem:[%s222 + $0x84] sm:$0xf]
        %v258 = vld [vmem:[%s222 + $0x88] sm:$0xf]
        %v259 = vld [vmem:[%s222 + $0x8c] sm:$0x1]
        %v260 = vld [vmem:[%s222 + $0x90] sm:$0xf]
        %v261 = vld [vmem:[%s222 + $0x94] sm:$0xf]
        %v262 = vld [vmem:[%s222 + $0x98] sm:$0x1]
        %v263 = vld [vmem:[%s222 + $0x9c] sm:$0xf]
        %v264 = vld [vmem:[%s222 + $0xa0] sm:$0xf]
        %v265 = vld [vmem:[%s222 + $0xa4] sm:$0x1]
        %v266 = vld [vmem:[%s222 + $0xa8] sm:$0xf]
        %v267 = vld [vmem:[%s222 + $0xac] sm:$0xf]
        %v268 = vld [vmem:[%s222 + $0xb0] sm:$0x1]
        %v269 = vld [vmem:[%s222 + $0xb4] sm:$0xf]
        %v270 = vld [vmem:[%s222 + $0xb8] sm:$0xf]
        %v271 = vld [vmem:[%s222 + $0xbc] sm:$0x1]
        %v272 = vld [vmem:[%s222 + $0xc0] sm:$0xf]
        %v273 = vld [vmem:[%s222 + $0xc4] sm:$0xf]
        %v274 = vld [vmem:[%s222 + $0xc8] sm:$0x1]
        %v275 = vld [vmem:[%s222 + $0xcc] sm:$0xf]
        %v276 = vld [vmem:[%s222 + $0xd0] sm:$0xf]
        %v277 = vld [vmem:[%s222 + $0xd4] sm:$0x1]
        %v310 = vunpack.c.l.b16 %v224
        %v311 = vunpack.c.l.b16 %v225
        %v312 = vunpack.c.l.b16 %v227
        %v313 = vunpack.c.l.b16 %v228
        %v314 = vunpack.c.l.b16 %v230
        %v315 = vunpack.c.l.b16 %v231
        %v316 = vunpack.c.l.b16 %v233
        %v317 = vunpack.c.l.b16 %v234
        %v318 = vunpack.c.l.b16 %v236
        %v319 = vunpack.c.l.b16 %v237
        %v320 = vunpack.c.l.b16 %v239
        %v321 = vunpack.c.l.b16 %v240
        %v322 = vunpack.c.l.b16 %v242
        %v323 = vunpack.c.l.b16 %v243
        %v324 = vunpack.c.l.b16 %v245
        %v325 = vunpack.c.l.b16 %v246
        %v326 = vunpack.c.l.b16 %v248
        %v327 = vunpack.c.l.b16 %v249
        %v328 = vunpack.c.l.b16 %v251
        %v329 = vunpack.c.l.b16 %v252
        %v330 = vunpack.c.l.b16 %v254
        %v331 = vunpack.c.l.b16 %v255
        %v332 = vunpack.c.l.b16 %v257
        %v333 = vunpack.c.l.b16 %v258
        %v334 = vunpack.c.l.b16 %v260
        %v335 = vunpack.c.l.b16 %v261
        %v336 = vunpack.c.l.b16 %v263
        %v337 = vunpack.c.l.b16 %v264
        %v338 = vunpack.c.l.b16 %v266
        %v339 = vunpack.c.l.b16 %v267
        %v340 = vunpack.c.l.b16 %v269
        %v341 = vunpack.c.l.b16 %v270
        %v342 = vpack.c.b16 %v311, %v310
        %v343 = vpack.c.b16 %v313, %v312
        %v344 = vpack.c.b16 %v315, %v314
        %v345 = vpack.c.b16 %v317, %v316
        %v346 = vpack.c.b16 %v319, %v318
        %v347 = vpack.c.b16 %v321, %v320
        %v348 = vpack.c.b16 %v323, %v322
        %v349 = vpack.c.b16 %v325, %v324
        %v350 = vpack.c.b16 %v327, %v326
        %v351 = vpack.c.b16 %v329, %v328
        %v352 = vpack.c.b16 %v331, %v330
        %v353 = vpack.c.b16 %v333, %v332
        %v354 = vpack.c.b16 %v335, %v334
        %v355 = vpack.c.b16 %v337, %v336
        %v356 = vpack.c.b16 %v339, %v338
        %v357 = vpack.c.b16 %v341, %v340
        %v374 = vunpack.c.l.b16 %v226
        %v375 = vunpack.c.l.b16 %v229
        %v376 = vunpack.c.l.b16 %v232
        %v377 = vunpack.c.l.b16 %v235
        %v378 = vunpack.c.l.b16 %v238
        %v379 = vunpack.c.l.b16 %v241
        %v380 = vunpack.c.l.b16 %v244
        %v381 = vunpack.c.l.b16 %v247
        %v382 = vunpack.c.l.b16 %v250
        %v383 = vunpack.c.l.b16 %v253
        %v384 = vunpack.c.l.b16 %v256
        %v385 = vunpack.c.l.b16 %v259
        %v386 = vunpack.c.l.b16 %v262
        %v387 = vunpack.c.l.b16 %v265
        %v388 = vunpack.c.l.b16 %v268
        %v389 = vunpack.c.l.b16 %v271
        %v390 = vpack.c.b16 %v374, %v374
        %v391 = vpack.c.b16 %v375, %v375
        %v392 = vpack.c.b16 %v376, %v376
        %v393 = vpack.c.b16 %v377, %v377
        %v394 = vpack.c.b16 %v378, %v378
        %v395 = vpack.c.b16 %v379, %v379
        %v396 = vpack.c.b16 %v380, %v380
        %v397 = vpack.c.b16 %v381, %v381
        %v398 = vpack.c.b16 %v382, %v382
        %v399 = vpack.c.b16 %v383, %v383
        %v400 = vpack.c.b16 %v384, %v384
        %v401 = vpack.c.b16 %v385, %v385
        %v402 = vpack.c.b16 %v386, %v386
        %v403 = vpack.c.b16 %v387, %v387
        %v404 = vpack.c.b16 %v388, %v388
        %v405 = vpack.c.b16 %v389, %v389
        %vm406 = vsmask.f32 7424
        %v408 = vshrl.u32 %v342, 16
        %v410 = vshll.u32 %v342, 16
        %v412 = vrot.slane %v410, 1
        %v413 = vor.u32 %v408, %v412
        %v415 = vshll.u32 %v390, 16
        %v417 = vrot.slane %v415, 1
        %v418 = vsel %vm406, %v413, %v417
        %v420 = vshrl.u32 %v343, 16
        %v422 = vshll.u32 %v343, 16
        %v424 = vrot.slane %v422, 1
        %v425 = vor.u32 %v420, %v424
        %v427 = vshll.u32 %v391, 16
        %v429 = vrot.slane %v427, 1
        %v430 = vsel %vm406, %v425, %v429
        %v432 = vshrl.u32 %v344, 16
        %v434 = vshll.u32 %v344, 16
        %v436 = vrot.slane %v434, 1
        %v437 = vor.u32 %v432, %v436
        %v439 = vshll.u32 %v392, 16
        %v441 = vrot.slane %v439, 1
        %v442 = vsel %vm406, %v437, %v441
        %v444 = vshrl.u32 %v345, 16
        %v446 = vshll.u32 %v345, 16
        %v448 = vrot.slane %v446, 1
        %v449 = vor.u32 %v444, %v448
        %v451 = vshll.u32 %v393, 16
        %v453 = vrot.slane %v451, 1
        %v454 = vsel %vm406, %v449, %v453
        %v456 = vshrl.u32 %v346, 16
        %v458 = vshll.u32 %v346, 16
        %v460 = vrot.slane %v458, 1
        %v461 = vor.u32 %v456, %v460
        %v463 = vshll.u32 %v394, 16
        %v465 = vrot.slane %v463, 1
        %v466 = vsel %vm406, %v461, %v465
        %v468 = vshrl.u32 %v347, 16
        %v470 = vshll.u32 %v347, 16
        %v472 = vrot.slane %v470, 1
        %v473 = vor.u32 %v468, %v472
        %v475 = vshll.u32 %v395, 16
        %v477 = vrot.slane %v475, 1
        %v478 = vsel %vm406, %v473, %v477
        %v480 = vshrl.u32 %v348, 16
        %v482 = vshll.u32 %v348, 16
        %v484 = vrot.slane %v482, 1
        %v485 = vor.u32 %v480, %v484
        %v487 = vshll.u32 %v396, 16
        %v489 = vrot.slane %v487, 1
        %v490 = vsel %vm406, %v485, %v489
        %v492 = vshrl.u32 %v349, 16
        %v494 = vshll.u32 %v349, 16
        %v496 = vrot.slane %v494, 1
        %v497 = vor.u32 %v492, %v496
        %v499 = vshll.u32 %v397, 16
        %v501 = vrot.slane %v499, 1
        %v502 = vsel %vm406, %v497, %v501
        %v504 = vshrl.u32 %v350, 16
        %v506 = vshll.u32 %v350, 16
        %v508 = vrot.slane %v506, 1
        %v509 = vor.u32 %v504, %v508
        %v511 = vshll.u32 %v398, 16
        %v513 = vrot.slane %v511, 1
        %v514 = vsel %vm406, %v509, %v513
        %v516 = vshrl.u32 %v351, 16
        %v518 = vshll.u32 %v351, 16
        %v520 = vrot.slane %v518, 1
        %v521 = vor.u32 %v516, %v520
        %v523 = vshll.u32 %v399, 16
        %v525 = vrot.slane %v523, 1
        %v526 = vsel %vm406, %v521, %v525
        %v528 = vshrl.u32 %v352, 16
        %v530 = vshll.u32 %v352, 16
        %v532 = vrot.slane %v530, 1
        %v533 = vor.u32 %v528, %v532
        %v535 = vshll.u32 %v400, 16
        %v537 = vrot.slane %v535, 1
        %v538 = vsel %vm406, %v533, %v537
        %v540 = vshrl.u32 %v353, 16
        %v542 = vshll.u32 %v353, 16
        %v544 = vrot.slane %v542, 1
        %v545 = vor.u32 %v540, %v544
        %v547 = vshll.u32 %v401, 16
        %v549 = vrot.slane %v547, 1
        %v550 = vsel %vm406, %v545, %v549
        %v552 = vshrl.u32 %v354, 16
        %v554 = vshll.u32 %v354, 16
        %v556 = vrot.slane %v554, 1
        %v557 = vor.u32 %v552, %v556
        %v559 = vshll.u32 %v402, 16
        %v561 = vrot.slane %v559, 1
        %v562 = vsel %vm406, %v557, %v561
        %v564 = vshrl.u32 %v355, 16
        %v566 = vshll.u32 %v355, 16
        %v568 = vrot.slane %v566, 1
        %v569 = vor.u32 %v564, %v568
        %v571 = vshll.u32 %v403, 16
        %v573 = vrot.slane %v571, 1
        %v574 = vsel %vm406, %v569, %v573
        %v576 = vshrl.u32 %v356, 16
        %v578 = vshll.u32 %v356, 16
        %v580 = vrot.slane %v578, 1
        %v581 = vor.u32 %v576, %v580
        %v583 = vshll.u32 %v404, 16
        %v585 = vrot.slane %v583, 1
        %v586 = vsel %vm406, %v581, %v585
        %v588 = vshrl.u32 %v357, 16
        %v590 = vshll.u32 %v357, 16
        %v592 = vrot.slane %v590, 1
        %v593 = vor.u32 %v588, %v592
        %v595 = vshll.u32 %v405, 16
        %v597 = vrot.slane %v595, 1
        %v598 = vsel %vm406, %v593, %v597
        %599 = vrot.lane.b32.xlu0 %v418, 4
        %v600 = vpop.permute.xlu0 %599
        %601 = vrot.lane.b32.xlu0 %v430, 4
        %v602 = vpop.permute.xlu0 %601
        %603 = vrot.lane.b32.xlu0 %v442, 4
        %v604 = vpop.permute.xlu0 %603
        %605 = vrot.lane.b32.xlu0 %v454, 4
        %v606 = vpop.permute.xlu0 %605
        %607 = vrot.lane.b32.xlu0 %v466, 4
        %v608 = vpop.permute.xlu0 %607
        %609 = vrot.lane.b32.xlu0 %v478, 4
        %v610 = vpop.permute.xlu0 %609
        %611 = vrot.lane.b32.xlu0 %v490, 4
        %v612 = vpop.permute.xlu0 %611
        %613 = vrot.lane.b32.xlu0 %v502, 4
        %v614 = vpop.permute.xlu0 %613
        %615 = vrot.lane.b32.xlu0 %v514, 4
        %v616 = vpop.permute.xlu0 %615
        %617 = vrot.lane.b32.xlu0 %v526, 4
        %v618 = vpop.permute.xlu0 %617
        %619 = vrot.lane.b32.xlu0 %v538, 4
        %v620 = vpop.permute.xlu0 %619
        %621 = vrot.lane.b32.xlu0 %v550, 4
        %v622 = vpop.permute.xlu0 %621
        %623 = vrot.lane.b32.xlu0 %v562, 4
        %v624 = vpop.permute.xlu0 %623
        %625 = vrot.lane.b32.xlu0 %v574, 4
        %v626 = vpop.permute.xlu0 %625
        %627 = vrot.lane.b32.xlu0 %v586, 4
        %v628 = vpop.permute.xlu0 %627
        %629 = vrot.lane.b32.xlu0 %v598, 4
        %v630 = vpop.permute.xlu0 %629
        %vm631 = vcmask 1046528
        %v632 = vrot.slane %v342, 1
        %v633 = vrot.slane %v390, 1
        %v634 = vsel %vm631, %v632, %v633
        %v635 = vrot.slane %v343, 1
        %v636 = vrot.slane %v391, 1
        %v637 = vsel %vm631, %v635, %v636
        %v638 = vrot.slane %v344, 1
        %v639 = vrot.slane %v392, 1
        %v640 = vsel %vm631, %v638, %v639
        %v641 = vrot.slane %v345, 1
        %v642 = vrot.slane %v393, 1
        %v643 = vsel %vm631, %v641, %v642
        %v644 = vrot.slane %v346, 1
        %v645 = vrot.slane %v394, 1
        %v646 = vsel %vm631, %v644, %v645
        %v647 = vrot.slane %v347, 1
        %v648 = vrot.slane %v395, 1
        %v649 = vsel %vm631, %v647, %v648
        %v650 = vrot.slane %v348, 1
        %v651 = vrot.slane %v396, 1
        %v652 = vsel %vm631, %v650, %v651
        %v653 = vrot.slane %v349, 1
        %v654 = vrot.slane %v397, 1
        %v655 = vsel %vm631, %v653, %v654
        %v656 = vrot.slane %v350, 1
        %v657 = vrot.slane %v398, 1
        %v658 = vsel %vm631, %v656, %v657
        %v659 = vrot.slane %v351, 1
        %v660 = vrot.slane %v399, 1
        %v661 = vsel %vm631, %v659, %v660
        %v662 = vrot.slane %v352, 1
        %v663 = vrot.slane %v400, 1
        %v664 = vsel %vm631, %v662, %v663
        %v665 = vrot.slane %v353, 1
        %v666 = vrot.slane %v401, 1
        %v667 = vsel %vm631, %v665, %v666
        %v668 = vrot.slane %v354, 1
        %v669 = vrot.slane %v402, 1
        %v670 = vsel %vm631, %v668, %v669
        %v671 = vrot.slane %v355, 1
        %v672 = vrot.slane %v403, 1
        %v673 = vsel %vm631, %v671, %v672
        %v674 = vrot.slane %v356, 1
        %v675 = vrot.slane %v404, 1
        %v676 = vsel %vm631, %v674, %v675
        %v677 = vrot.slane %v357, 1
        %v678 = vrot.slane %v405, 1
        %v679 = vsel %vm631, %v677, %v678
        %680 = vrot.lane.b32.xlu0 %v634, 8
        %v681 = vpop.permute.xlu0 %680
        %682 = vrot.lane.b32.xlu0 %v637, 8
        %v683 = vpop.permute.xlu0 %682
        %684 = vrot.lane.b32.xlu0 %v640, 8
        %v685 = vpop.permute.xlu0 %684
        %686 = vrot.lane.b32.xlu0 %v643, 8
        %v687 = vpop.permute.xlu0 %686
        %688 = vrot.lane.b32.xlu0 %v646, 8
        %v689 = vpop.permute.xlu0 %688
        %690 = vrot.lane.b32.xlu0 %v649, 8
        %v691 = vpop.permute.xlu0 %690
        %692 = vrot.lane.b32.xlu0 %v652, 8
        %v693 = vpop.permute.xlu0 %692
        %694 = vrot.lane.b32.xlu0 %v655, 8
        %v695 = vpop.permute.xlu0 %694
        %696 = vrot.lane.b32.xlu0 %v658, 8
        %v697 = vpop.permute.xlu0 %696
        %698 = vrot.lane.b32.xlu0 %v661, 8
        %v699 = vpop.permute.xlu0 %698
        %700 = vrot.lane.b32.xlu0 %v664, 8
        %v701 = vpop.permute.xlu0 %700
        %702 = vrot.lane.b32.xlu0 %v667, 8
        %v703 = vpop.permute.xlu0 %702
        %704 = vrot.lane.b32.xlu0 %v670, 8
        %v705 = vpop.permute.xlu0 %704
        %706 = vrot.lane.b32.xlu0 %v673, 8
        %v707 = vpop.permute.xlu0 %706
        %708 = vrot.lane.b32.xlu0 %v676, 8
        %v709 = vpop.permute.xlu0 %708
        %710 = vrot.lane.b32.xlu0 %v679, 8
        %v711 = vpop.permute.xlu0 %710
        %v714 = vunpack.c.l.b16 %v272
        %v715 = vunpack.c.l.b16 %v273
        %v716 = vpack.c.b16 %v715, %v714
        %717 = vrot.lane.b32.xlu0 %v343, 12
        %v718 = vpop.permute.xlu0 %717
        %719 = vrot.lane.b32.xlu0 %v344, 12
        %v720 = vpop.permute.xlu0 %719
        %721 = vrot.lane.b32.xlu0 %v345, 12
        %v722 = vpop.permute.xlu0 %721
        %723 = vrot.lane.b32.xlu0 %v346, 12
        %v724 = vpop.permute.xlu0 %723
        %725 = vrot.lane.b32.xlu0 %v347, 12
        %v726 = vpop.permute.xlu0 %725
        %727 = vrot.lane.b32.xlu0 %v348, 12
        %v728 = vpop.permute.xlu0 %727
        %729 = vrot.lane.b32.xlu0 %v349, 12
        %v730 = vpop.permute.xlu0 %729
        %731 = vrot.lane.b32.xlu0 %v350, 12
        %v732 = vpop.permute.xlu0 %731
        %733 = vrot.lane.b32.xlu0 %v351, 12
        %v734 = vpop.permute.xlu0 %733
        %735 = vrot.lane.b32.xlu0 %v352, 12
        %v736 = vpop.permute.xlu0 %735
        %737 = vrot.lane.b32.xlu0 %v353, 12
        %v738 = vpop.permute.xlu0 %737
        %739 = vrot.lane.b32.xlu0 %v354, 12
        %v740 = vpop.permute.xlu0 %739
        %741 = vrot.lane.b32.xlu0 %v355, 12
        %v742 = vpop.permute.xlu0 %741
        %743 = vrot.lane.b32.xlu0 %v356, 12
        %v744 = vpop.permute.xlu0 %743
        %745 = vrot.lane.b32.xlu0 %v357, 12
        %v746 = vpop.permute.xlu0 %745
        %747 = vrot.lane.b32.xlu0 %v716, 12
        %v748 = vpop.permute.xlu0 %747
        %v750 = vunpack.c.l.b16 %v274
        %v751 = vpack.c.b16 %v750, %v750
        %v753 = vshrl.u32 %v716, 16
        %v755 = vshll.u32 %v716, 16
        %v757 = vrot.slane %v755, 1
        %v758 = vor.u32 %v753, %v757
        %v760 = vshll.u32 %v751, 16
        %v762 = vrot.slane %v760, 1
        %v763 = vsel %vm406, %v758, %v762
        %764 = vrot.lane.b32.xlu0 %v430, 16
        %v765 = vpop.permute.xlu0 %764
        %766 = vrot.lane.b32.xlu0 %v442, 16
        %v767 = vpop.permute.xlu0 %766
        %768 = vrot.lane.b32.xlu0 %v454, 16
        %v769 = vpop.permute.xlu0 %768
        %770 = vrot.lane.b32.xlu0 %v466, 16
        %v771 = vpop.permute.xlu0 %770
        %772 = vrot.lane.b32.xlu0 %v478, 16
        %v773 = vpop.permute.xlu0 %772
        %774 = vrot.lane.b32.xlu0 %v490, 16
        %v775 = vpop.permute.xlu0 %774
        %776 = vrot.lane.b32.xlu0 %v502, 16
        %v777 = vpop.permute.xlu0 %776
        %778 = vrot.lane.b32.xlu0 %v514, 16
        %v779 = vpop.permute.xlu0 %778
        %780 = vrot.lane.b32.xlu0 %v526, 16
        %v781 = vpop.permute.xlu0 %780
        %782 = vrot.lane.b32.xlu0 %v538, 16
        %v783 = vpop.permute.xlu0 %782
        %784 = vrot.lane.b32.xlu0 %v550, 16
        %v785 = vpop.permute.xlu0 %784
        %786 = vrot.lane.b32.xlu0 %v562, 16
        %v787 = vpop.permute.xlu0 %786
        %788 = vrot.lane.b32.xlu0 %v574, 16
        %v789 = vpop.permute.xlu0 %788
        %790 = vrot.lane.b32.xlu0 %v586, 16
        %v791 = vpop.permute.xlu0 %790
        %792 = vrot.lane.b32.xlu0 %v598, 16
        %v793 = vpop.permute.xlu0 %792
        %794 = vrot.lane.b32.xlu0 %v763, 16
        %v795 = vpop.permute.xlu0 %794
        %v796 = vrot.slane %v716, 1
        %v797 = vrot.slane %v751, 1
        %v798 = vsel %vm631, %v796, %v797
        %799 = vrot.lane.b32.xlu0 %v637, 20
        %v800 = vpop.permute.xlu0 %799
        %801 = vrot.lane.b32.xlu0 %v640, 20
        %v802 = vpop.permute.xlu0 %801
        %803 = vrot.lane.b32.xlu0 %v643, 20
        %v804 = vpop.permute.xlu0 %803
        %805 = vrot.lane.b32.xlu0 %v646, 20
        %v806 = vpop.permute.xlu0 %805
        %807 = vrot.lane.b32.xlu0 %v649, 20
        %v808 = vpop.permute.xlu0 %807
        %809 = vrot.lane.b32.xlu0 %v652, 20
        %v810 = vpop.permute.xlu0 %809
        %811 = vrot.lane.b32.xlu0 %v655, 20
        %v812 = vpop.permute.xlu0 %811
        %813 = vrot.lane.b32.xlu0 %v658, 20
        %v814 = vpop.permute.xlu0 %813
        %815 = vrot.lane.b32.xlu0 %v661, 20
        %v816 = vpop.permute.xlu0 %815
        %817 = vrot.lane.b32.xlu0 %v664, 20
        %v818 = vpop.permute.xlu0 %817
        %819 = vrot.lane.b32.xlu0 %v667, 20
        %v820 = vpop.permute.xlu0 %819
        %821 = vrot.lane.b32.xlu0 %v670, 20
        %v822 = vpop.permute.xlu0 %821
        %823 = vrot.lane.b32.xlu0 %v673, 20
        %v824 = vpop.permute.xlu0 %823
        %825 = vrot.lane.b32.xlu0 %v676, 20
        %v826 = vpop.permute.xlu0 %825
        %827 = vrot.lane.b32.xlu0 %v679, 20
        %v828 = vpop.permute.xlu0 %827
        %829 = vrot.lane.b32.xlu0 %v798, 20
        %v830 = vpop.permute.xlu0 %829
        %v833 = vunpack.c.l.b16 %v275
        %v834 = vunpack.c.l.b16 %v276
        %v835 = vpack.c.b16 %v834, %v833
        %836 = vrot.lane.b32.xlu0 %v344, 24
        %v837 = vpop.permute.xlu0 %836
        %838 = vrot.lane.b32.xlu0 %v345, 24
        %v839 = vpop.permute.xlu0 %838
        %840 = vrot.lane.b32.xlu0 %v346, 24
        %v841 = vpop.permute.xlu0 %840
        %842 = vrot.lane.b32.xlu0 %v347, 24
        %v843 = vpop.permute.xlu0 %842
        %844 = vrot.lane.b32.xlu0 %v348, 24
        %v845 = vpop.permute.xlu0 %844
        %846 = vrot.lane.b32.xlu0 %v349, 24
        %v847 = vpop.permute.xlu0 %846
        %848 = vrot.lane.b32.xlu0 %v350, 24
        %v849 = vpop.permute.xlu0 %848
        %850 = vrot.lane.b32.xlu0 %v351, 24
        %v851 = vpop.permute.xlu0 %850
        %852 = vrot.lane.b32.xlu0 %v352, 24
        %v853 = vpop.permute.xlu0 %852
        %854 = vrot.lane.b32.xlu0 %v353, 24
        %v855 = vpop.permute.xlu0 %854
        %856 = vrot.lane.b32.xlu0 %v354, 24
        %v857 = vpop.permute.xlu0 %856
        %858 = vrot.lane.b32.xlu0 %v355, 24
        %v859 = vpop.permute.xlu0 %858
        %860 = vrot.lane.b32.xlu0 %v356, 24
        %v861 = vpop.permute.xlu0 %860
        %862 = vrot.lane.b32.xlu0 %v357, 24
        %v863 = vpop.permute.xlu0 %862
        %864 = vrot.lane.b32.xlu0 %v716, 24
        %v865 = vpop.permute.xlu0 %864
        %866 = vrot.lane.b32.xlu0 %v835, 24
        %v867 = vpop.permute.xlu0 %866
        %v869 = vunpack.c.l.b16 %v277
        %v870 = vpack.c.b16 %v869, %v869
        %v872 = vshrl.u32 %v835, 16
        %v874 = vshll.u32 %v835, 16
        %v876 = vrot.slane %v874, 1
        %v877 = vor.u32 %v872, %v876
        %v879 = vshll.u32 %v870, 16
        %v881 = vrot.slane %v879, 1
        %v882 = vsel %vm406, %v877, %v881
        %883 = vrot.lane.b32.xlu0 %v442, 28
        %v884 = vpop.permute.xlu0 %883
        %885 = vrot.lane.b32.xlu0 %v454, 28
        %v886 = vpop.permute.xlu0 %885
        %887 = vrot.lane.b32.xlu0 %v466, 28
        %v888 = vpop.permute.xlu0 %887
        %889 = vrot.lane.b32.xlu0 %v478, 28
        %v890 = vpop.permute.xlu0 %889
        %891 = vrot.lane.b32.xlu0 %v490, 28
        %v892 = vpop.permute.xlu0 %891
        %893 = vrot.lane.b32.xlu0 %v502, 28
        %v894 = vpop.permute.xlu0 %893
        %895 = vrot.lane.b32.xlu0 %v514, 28
        %v896 = vpop.permute.xlu0 %895
        %897 = vrot.lane.b32.xlu0 %v526, 28
        %v898 = vpop.permute.xlu0 %897
        %899 = vrot.lane.b32.xlu0 %v538, 28
        %v900 = vpop.permute.xlu0 %899
        %901 = vrot.lane.b32.xlu0 %v550, 28
        %v902 = vpop.permute.xlu0 %901
        %903 = vrot.lane.b32.xlu0 %v562, 28
        %v904 = vpop.permute.xlu0 %903
        %905 = vrot.lane.b32.xlu0 %v574, 28
        %v906 = vpop.permute.xlu0 %905
        %907 = vrot.lane.b32.xlu0 %v586, 28
        %v908 = vpop.permute.xlu0 %907
        %909 = vrot.lane.b32.xlu0 %v598, 28
        %v910 = vpop.permute.xlu0 %909
        %911 = vrot.lane.b32.xlu0 %v763, 28
        %v912 = vpop.permute.xlu0 %911
        %913 = vrot.lane.b32.xlu0 %v882, 28
        %v914 = vpop.permute.xlu0 %913
        %v915 = vrot.slane %v835, 1
        %v916 = vrot.slane %v870, 1
        %v917 = vsel %vm631, %v915, %v916
        %918 = vrot.lane.b32.xlu0 %v640, 32
        %v919 = vpop.permute.xlu0 %918
        %920 = vrot.lane.b32.xlu0 %v643, 32
        %v921 = vpop.permute.xlu0 %920
        %922 = vrot.lane.b32.xlu0 %v646, 32
        %v923 = vpop.permute.xlu0 %922
        %924 = vrot.lane.b32.xlu0 %v649, 32
        %v925 = vpop.permute.xlu0 %924
        %926 = vrot.lane.b32.xlu0 %v652, 32
        %v927 = vpop.permute.xlu0 %926
        %928 = vrot.lane.b32.xlu0 %v655, 32
        %v929 = vpop.permute.xlu0 %928
        %930 = vrot.lane.b32.xlu0 %v658, 32
        %v931 = vpop.permute.xlu0 %930
        %932 = vrot.lane.b32.xlu0 %v661, 32
        %v933 = vpop.permute.xlu0 %932
        %934 = vrot.lane.b32.xlu0 %v664, 32
        %v935 = vpop.permute.xlu0 %934
        %936 = vrot.lane.b32.xlu0 %v667, 32
        %v937 = vpop.permute.xlu0 %936
        %938 = vrot.lane.b32.xlu0 %v670, 32
        %v939 = vpop.permute.xlu0 %938
        %940 = vrot.lane.b32.xlu0 %v673, 32
        %v941 = vpop.permute.xlu0 %940
        %942 = vrot.lane.b32.xlu0 %v676, 32
        %v943 = vpop.permute.xlu0 %942
        %944 = vrot.lane.b32.xlu0 %v679, 32
        %v945 = vpop.permute.xlu0 %944
        %946 = vrot.lane.b32.xlu0 %v798, 32
        %v947 = vpop.permute.xlu0 %946
        %948 = vrot.lane.b32.xlu0 %v917, 32
        %v949 = vpop.permute.xlu0 %948
        %vm950 = vcmask 31744
        %v952 = vsel %vm950, %v342, %v600
        %v954 = vsel %vm950, %v343, %v602
        %v956 = vsel %vm950, %v344, %v604
        %v958 = vsel %vm950, %v345, %v606
        %v960 = vsel %vm950, %v346, %v608
        %v962 = vsel %vm950, %v347, %v610
        %v964 = vsel %vm950, %v348, %v612
        %v966 = vsel %vm950, %v349, %v614
        %v968 = vsel %vm950, %v350, %v616
        %v970 = vsel %vm950, %v351, %v618
        %v972 = vsel %vm950, %v352, %v620
        %v974 = vsel %vm950, %v353, %v622
        %v976 = vsel %vm950, %v354, %v624
        %v978 = vsel %vm950, %v355, %v626
        %v980 = vsel %vm950, %v356, %v628
        %v982 = vsel %vm950, %v357, %v630
        %vm983 = vcmask 64512
        %v985 = vsel %vm983, %v952, %v681
        %v987 = vsel %vm983, %v954, %v683
        %v989 = vsel %vm983, %v956, %v685
        %v991 = vsel %vm983, %v958, %v687
        %v993 = vsel %vm983, %v960, %v689
        %v995 = vsel %vm983, %v962, %v691
        %v997 = vsel %vm983, %v964, %v693
        %v999 = vsel %vm983, %v966, %v695
        %v1001 = vsel %vm983, %v968, %v697
        %v1003 = vsel %vm983, %v970, %v699
        %v1005 = vsel %vm983, %v972, %v701
        %v1007 = vsel %vm983, %v974, %v703
        %v1009 = vsel %vm983, %v976, %v705
        %v1011 = vsel %vm983, %v978, %v707
        %v1013 = vsel %vm983, %v980, %v709
        %v1015 = vsel %vm983, %v982, %v711
        %vm1016 = vcmask 97280
        %v1018 = vsel %vm1016, %v985, %v718
        %v1020 = vsel %vm1016, %v987, %v720
        %v1022 = vsel %vm1016, %v989, %v722
        %v1024 = vsel %vm1016, %v991, %v724
        %v1026 = vsel %vm1016, %v993, %v726
        %v1028 = vsel %vm1016, %v995, %v728
        %v1030 = vsel %vm1016, %v997, %v730
        %v1032 = vsel %vm1016, %v999, %v732
        %v1034 = vsel %vm1016, %v1001, %v734
        %v1036 = vsel %vm1016, %v1003, %v736
        %v1038 = vsel %vm1016, %v1005, %v738
        %v1040 = vsel %vm1016, %v1007, %v740
        %v1042 = vsel %vm1016, %v1009, %v742
        %v1044 = vsel %vm1016, %v1011, %v744
        %v1046 = vsel %vm1016, %v1013, %v746
        %v1048 = vsel %vm1016, %v1015, %v748
        %vm1049 = vcmask 130048
        %v1051 = vsel %vm1049, %v1018, %v765
        %v1053 = vsel %vm1049, %v1020, %v767
        %v1055 = vsel %vm1049, %v1022, %v769
        %v1057 = vsel %vm1049, %v1024, %v771
        %v1059 = vsel %vm1049, %v1026, %v773
        %v1061 = vsel %vm1049, %v1028, %v775
        %v1063 = vsel %vm1049, %v1030, %v777
        %v1065 = vsel %vm1049, %v1032, %v779
        %v1067 = vsel %vm1049, %v1034, %v781
        %v1069 = vsel %vm1049, %v1036, %v783
        %v1071 = vsel %vm1049, %v1038, %v785
        %v1073 = vsel %vm1049, %v1040, %v787
        %v1075 = vsel %vm1049, %v1042, %v789
        %v1077 = vsel %vm1049, %v1044, %v791
        %v1079 = vsel %vm1049, %v1046, %v793
        %v1081 = vsel %vm1049, %v1048, %v795
        %vm1082 = vcmask 162816
        %v1084 = vsel %vm1082, %v1051, %v800
        %v1086 = vsel %vm1082, %v1053, %v802
        %v1088 = vsel %vm1082, %v1055, %v804
        %v1090 = vsel %vm1082, %v1057, %v806
        %v1092 = vsel %vm1082, %v1059, %v808
        %v1094 = vsel %vm1082, %v1061, %v810
        %v1096 = vsel %vm1082, %v1063, %v812
        %v1098 = vsel %vm1082, %v1065, %v814
        %v1100 = vsel %vm1082, %v1067, %v816
        %v1102 = vsel %vm1082, %v1069, %v818
        %v1104 = vsel %vm1082, %v1071, %v820
        %v1106 = vsel %vm1082, %v1073, %v822
        %v1108 = vsel %vm1082, %v1075, %v824
        %v1110 = vsel %vm1082, %v1077, %v826
        %v1112 = vsel %vm1082, %v1079, %v828
        %v1114 = vsel %vm1082, %v1081, %v830
        %vm1115 = vcmask 195584
        %v1117 = vsel %vm1115, %v1084, %v837
        %v1119 = vsel %vm1115, %v1086, %v839
        %v1121 = vsel %vm1115, %v1088, %v841
        %v1123 = vsel %vm1115, %v1090, %v843
        %v1125 = vsel %vm1115, %v1092, %v845
        %v1127 = vsel %vm1115, %v1094, %v847
        %v1129 = vsel %vm1115, %v1096, %v849
        %v1131 = vsel %vm1115, %v1098, %v851
        %v1133 = vsel %vm1115, %v1100, %v853
        %v1135 = vsel %vm1115, %v1102, %v855
        %v1137 = vsel %vm1115, %v1104, %v857
        %v1139 = vsel %vm1115, %v1106, %v859
        %v1141 = vsel %vm1115, %v1108, %v861
        %v1143 = vsel %vm1115, %v1110, %v863
        %v1145 = vsel %vm1115, %v1112, %v865
        %v1147 = vsel %vm1115, %v1114, %v867
        %vm1148 = vcmask 228352
        %v1150 = vsel %vm1148, %v1117, %v884
        %v1152 = vsel %vm1148, %v1119, %v886
        %v1154 = vsel %vm1148, %v1121, %v888
        %v1156 = vsel %vm1148, %v1123, %v890
        %v1158 = vsel %vm1148, %v1125, %v892
        %v1160 = vsel %vm1148, %v1127, %v894
        %v1162 = vsel %vm1148, %v1129, %v896
        %v1164 = vsel %vm1148, %v1131, %v898
        %v1166 = vsel %vm1148, %v1133, %v900
        %v1168 = vsel %vm1148, %v1135, %v902
        %v1170 = vsel %vm1148, %v1137, %v904
        %v1172 = vsel %vm1148, %v1139, %v906
        %v1174 = vsel %vm1148, %v1141, %v908
        %v1176 = vsel %vm1148, %v1143, %v910
        %v1178 = vsel %vm1148, %v1145, %v912
        %v1180 = vsel %vm1148, %v1147, %v914
        %vm1181 = vcmask 261120
        %v1183 = vsel %vm1181, %v1150, %v919
        %v1185 = vsel %vm1181, %v1152, %v921
        %v1187 = vsel %vm1181, %v1154, %v923
        %v1189 = vsel %vm1181, %v1156, %v925
        %v1191 = vsel %vm1181, %v1158, %v927
        %v1193 = vsel %vm1181, %v1160, %v929
        %v1195 = vsel %vm1181, %v1162, %v931
        %v1197 = vsel %vm1181, %v1164, %v933
        %v1199 = vsel %vm1181, %v1166, %v935
        %v1201 = vsel %vm1181, %v1168, %v937
        %v1203 = vsel %vm1181, %v1170, %v939
        %v1205 = vsel %vm1181, %v1172, %v941
        %v1207 = vsel %vm1181, %v1174, %v943
        %v1209 = vsel %vm1181, %v1176, %v945
        %v1211 = vsel %vm1181, %v1178, %v947
        %v1213 = vsel %vm1181, %v1180, %v949
        %v1214 = vld [vmem:[%s1] sm:$0xf]
        %v1215 = vld [vmem:[%s1 + $0x4] sm:$0xf]
        %v1216 = vld [vmem:[%s1 + $0x8] sm:$0xf]
        %v1217 = vld [vmem:[%s1 + $0xc] sm:$0xf]
        %v1218 = vld [vmem:[%s1 + $0x10] sm:$0x3]
        %v1219 = vld [vmem:[%s2] sm:$0x1]
        %v1221 = vlaneseq
        %v1222 = vshrl.u32 %v1221, 7
        %v1223 = vsub.s32 0, %v1222
        %v1224 = vrot.slane %v1219, %v1223
        %v1231 = vunpack.c.l.b16 %v1214
        %v1232 = vunpack.c.l.b16 %v1215
        %v1233 = vunpack.c.l.b16 %v1216
        %v1234 = vunpack.c.l.b16 %v1217
        %v1235 = vunpack.c.l.b16 %v1218
        %v1236 = vpack.c.b16 %v1232, %v1231
        %v1237 = vpack.c.b16 %v1234, %v1233
        %v1238 = vpack.c.b16 %v1235, %v1235
        %vm1241 = vcmask 293888
        %v1242 = vsel %vm1241, %v1183, 0
        %v1244 = vsel %vm1241, %v1185, 0
        %v1246 = vsel %vm1241, %v1187, 0
        %v1248 = vsel %vm1241, %v1189, 0
        %v1250 = vsel %vm1241, %v1191, 0
        %v1252 = vsel %vm1241, %v1193, 0
        %v1254 = vsel %vm1241, %v1195, 0
        %v1256 = vsel %vm1241, %v1197, 0
        %v1258 = vsel %vm1241, %v1199, 0
        %v1260 = vsel %vm1241, %v1201, 0
        %v1262 = vsel %vm1241, %v1203, 0
        %v1264 = vsel %vm1241, %v1205, 0
        %v1266 = vsel %vm1241, %v1207, 0
        %v1268 = vsel %vm1241, %v1209, 0
        %v1270 = vsel %vm1241, %v1211, 0
        %v1272 = vsel %vm1241, %v1213, 0
        %vm1274 = vcmask 1041408
        %v1276 = vsel %vm1274, %v1238, 0
        %1278 = vmatprep.subr.bf16.mxu0 0
        %1279 = vmatpush1.bf16.msra.mxu0 %v1236
        %1280 = vmatprep.subr.bf16.mxu0 0
        %1281 = vmatpush1.bf16.msra.mxu0 %v1237
        %1282 = vmatprep.subr.bf16.mxu0 0
        %1283 = vmatpush1.bf16.msra.mxu0 %v1276
        %1284 = vmatprep.subr.bf16.mxu0 0
        %1285 = vmatpush1.bf16.msra.mxu0 0
        %1286 = vmatprep.subr.bf16.mxu0 0
        %1287 = vmatpush1.bf16.msra.mxu0 0
        %1288 = vmatprep.subr.bf16.mxu0 0
        %1289 = vmatpush1.bf16.msra.mxu0 0
        %1290 = vmatprep.subr.bf16.mxu0 0
        %1291 = vmatpush1.bf16.msra.mxu0 0
        %1292 = vmatprep.subr.bf16.mxu0 0
        %1293 = vmatpush1.bf16.msra.mxu0 0
        %1294 = vmatprep.subr.bf16.mxu0 0
        %1295 = vmatpush1.bf16.msra.mxu0 0
        %1296 = vmatprep.subr.bf16.mxu0 0
        %1297 = vmatpush1.bf16.msra.mxu0 0
        %1298 = vmatprep.subr.bf16.mxu0 0
        %1299 = vmatpush1.bf16.msra.mxu0 0
        %1300 = vmatprep.subr.bf16.mxu0 0
        %1301 = vmatpush1.bf16.msra.mxu0 0
        %1302 = vmatprep.subr.bf16.mxu0 0
        %1303 = vmatpush1.bf16.msra.mxu0 0
        %1304 = vmatprep.subr.bf16.mxu0 0
        %1305 = vmatpush1.bf16.msra.mxu0 0
        %1306 = vmatprep.subr.bf16.mxu0 0
        %1307 = vmatpush1.bf16.msra.mxu0 0
        %1308 = vmatprep.subr.bf16.mxu0 0
        %1309 = vmatpush1.bf16.msra.mxu0 0
        %1310 = vmatprep.mubr.bf16.mxu0 0
        %1311 = vmatmul.mubr.bf16.gmra.mrb[0].mxu0 %v1242
        %v1312 = vpop.f32.mrb[0].mxu0
        %v1313 = vadd.f32 %v1224, %v1312
        %v1314 = vpop.f32.mrb[0].mxu0
        %v1315 = vpop.f32.mrb[0].mxu0
        %v1316 = vadd.f32 %v1224, %v1315
        %v1317 = vpop.f32.mrb[0].mxu0
        %1318 = vmatprep.mubr.bf16.mxu0 0
        %1319 = vmatmul.mubr.bf16.gmra.mrb[0].mxu0 %v1244
        %v1320 = vpop.f32.mrb[0].mxu0
        %v1321 = vadd.f32 %v1224, %v1320
        %v1322 = vpop.f32.mrb[0].mxu0
        %v1323 = vpop.f32.mrb[0].mxu0
        %v1324 = vadd.f32 %v1224, %v1323
        %v1325 = vpop.f32.mrb[0].mxu0
        %1326 = vmatprep.mubr.bf16.mxu0 0
        %1327 = vmatmul.mubr.bf16.gmra.mrb[0].mxu0 %v1246
        %v1328 = vpop.f32.mrb[0].mxu0
        %v1329 = vadd.f32 %v1224, %v1328
        %v1330 = vpop.f32.mrb[0].mxu0
        %v1331 = vpop.f32.mrb[0].mxu0
        %v1332 = vadd.f32 %v1224, %v1331
        %v1333 = vpop.f32.mrb[0].mxu0
        %1334 = vmatprep.mubr.bf16.mxu0 0
        %1335 = vmatmul.mubr.bf16.gmra.mrb[0].mxu0 %v1248
        %v1336 = vpop.f32.mrb[0].mxu0
        %v1337 = vadd.f32 %v1224, %v1336
        %v1338 = vpop.f32.mrb[0].mxu0
        %v1339 = vpop.f32.mrb[0].mxu0
        %v1340 = vadd.f32 %v1224, %v1339
        %v1341 = vpop.f32.mrb[0].mxu0
        %1342 = vmatprep.mubr.bf16.mxu0 0
        %1343 = vmatmul.mubr.bf16.gmra.mrb[0].mxu0 %v1250
        %v1344 = vpop.f32.mrb[0].mxu0
        %v1345 = vadd.f32 %v1224, %v1344
        %v1346 = vpop.f32.mrb[0].mxu0
        %v1347 = vpop.f32.mrb[0].mxu0
        %v1348 = vadd.f32 %v1224, %v1347
        %v1349 = vpop.f32.mrb[0].mxu0
        %1350 = vmatprep.mubr.bf16.mxu0 0
        %1351 = vmatmul.mubr.bf16.gmra.mrb[0].mxu0 %v1252
        %v1352 = vpop.f32.mrb[0].mxu0
        %v1353 = vadd.f32 %v1224, %v1352
        %v1354 = vpop.f32.mrb[0].mxu0
        %v1355 = vpop.f32.mrb[0].mxu0
        %v1356 = vadd.f32 %v1224, %v1355
        %v1357 = vpop.f32.mrb[0].mxu0
        %1358 = vmatprep.mubr.bf16.mxu0 0
        %1359 = vmatmul.mubr.bf16.gmra.mrb[0].mxu0 %v1254
        %v1360 = vpop.f32.mrb[0].mxu0
        %v1361 = vadd.f32 %v1224, %v1360
        %v1362 = vpop.f32.mrb[0].mxu0
        %v1363 = vpop.f32.mrb[0].mxu0
        %v1364 = vadd.f32 %v1224, %v1363
        %v1365 = vpop.f32.mrb[0].mxu0
        %1366 = vmatprep.mubr.bf16.mxu0 0
        %1367 = vmatmul.mubr.bf16.gmra.mrb[0].mxu0 %v1256
        %v1368 = vpop.f32.mrb[0].mxu0
        %v1369 = vadd.f32 %v1224, %v1368
        %v1370 = vpop.f32.mrb[0].mxu0
        %v1371 = vpop.f32.mrb[0].mxu0
        %v1372 = vadd.f32 %v1224, %v1371
        %v1373 = vpop.f32.mrb[0].mxu0
        %1374 = vmatprep.mubr.bf16.mxu0 0
        %1375 = vmatmul.mubr.bf16.gmra.mrb[0].mxu0 %v1258
        %v1376 = vpop.f32.mrb[0].mxu0
        %v1377 = vadd.f32 %v1224, %v1376
        %v1378 = vpop.f32.mrb[0].mxu0
        %v1379 = vpop.f32.mrb[0].mxu0
        %v1380 = vadd.f32 %v1224, %v1379
        %v1381 = vpop.f32.mrb[0].mxu0
        %1382 = vmatprep.mubr.bf16.mxu0 0
        %1383 = vmatmul.mubr.bf16.gmra.mrb[0].mxu0 %v1260
        %v1384 = vpop.f32.mrb[0].mxu0
        %v1385 = vadd.f32 %v1224, %v1384
        %v1386 = vpop.f32.mrb[0].mxu0
        %v1387 = vpop.f32.mrb[0].mxu0
        %v1388 = vadd.f32 %v1224, %v1387
        %v1389 = vpop.f32.mrb[0].mxu0
        %1390 = vmatprep.mubr.bf16.mxu0 0
        %1391 = vmatmul.mubr.bf16.gmra.mrb[0].mxu0 %v1262
        %v1392 = vpop.f32.mrb[0].mxu0
        %v1393 = vadd.f32 %v1224, %v1392
        %v1394 = vpop.f32.mrb[0].mxu0
        %v1395 = vpop.f32.mrb[0].mxu0
        %v1396 = vadd.f32 %v1224, %v1395
        %v1397 = vpop.f32.mrb[0].mxu0
        %1398 = vmatprep.mubr.bf16.mxu0 0
        %1399 = vmatmul.mubr.bf16.gmra.mrb[0].mxu0 %v1264
        %v1400 = vpop.f32.mrb[0].mxu0
        %v1401 = vadd.f32 %v1224, %v1400
        %v1402 = vpop.f32.mrb[0].mxu0
        %v1403 = vpop.f32.mrb[0].mxu0
        %v1404 = vadd.f32 %v1224, %v1403
        %v1405 = vpop.f32.mrb[0].mxu0
        %1406 = vmatprep.mubr.bf16.mxu0 0
        %1407 = vmatmul.mubr.bf16.gmra.mrb[0].mxu0 %v1266
        %v1408 = vpop.f32.mrb[0].mxu0
        %v1409 = vadd.f32 %v1224, %v1408
        %v1410 = vpop.f32.mrb[0].mxu0
        %v1411 = vpop.f32.mrb[0].mxu0
        %v1412 = vadd.f32 %v1224, %v1411
        %v1413 = vpop.f32.mrb[0].mxu0
        %1414 = vmatprep.mubr.bf16.mxu0 0
        %1415 = vmatmul.mubr.bf16.gmra.mrb[0].mxu0 %v1268
        %v1416 = vpop.f32.mrb[0].mxu0
        %v1417 = vadd.f32 %v1224, %v1416
        %v1418 = vpop.f32.mrb[0].mxu0
        %v1419 = vpop.f32.mrb[0].mxu0
        %v1420 = vadd.f32 %v1224, %v1419
        %v1421 = vpop.f32.mrb[0].mxu0
        %1422 = vmatprep.mubr.bf16.mxu0 0
        %1423 = vmatmul.mubr.bf16.gmra.mrb[0].mxu0 %v1270
        %v1424 = vpop.f32.mrb[0].mxu0
        %v1425 = vadd.f32 %v1224, %v1424
        %v1426 = vpop.f32.mrb[0].mxu0
        %v1427 = vpop.f32.mrb[0].mxu0
        %v1428 = vadd.f32 %v1224, %v1427
        %v1429 = vpop.f32.mrb[0].mxu0
        %1430 = vmatprep.mubr.bf16.mxu0 0
        %1431 = vmatmul.mubr.bf16.gmra.mrb[0].mxu0 %v1272
        %v1432 = vpop.f32.mrb[0].mxu0
        %v1433 = vadd.f32 %v1224, %v1432
        %v1434 = vpop.f32.mrb[0].mxu0
        %v1435 = vpop.f32.mrb[0].mxu0
        %v1436 = vadd.f32 %v1224, %v1435
        %v1437 = vpop.f32.mrb[0].mxu0
        %1438 = vdwg.mxu0
        %v1439 = vmax.f32 %v1313, 0.0
        %v1440 = vmax.f32 %v1316, 0.0
        %v1441 = vmax.f32 %v1321, 0.0
        %v1442 = vmax.f32 %v1324, 0.0
        %v1443 = vmax.f32 %v1329, 0.0
        %v1444 = vmax.f32 %v1332, 0.0
        %v1445 = vmax.f32 %v1337, 0.0
        %v1446 = vmax.f32 %v1340, 0.0
        %v1447 = vmax.f32 %v1345, 0.0
        %v1448 = vmax.f32 %v1348, 0.0
        %v1449 = vmax.f32 %v1353, 0.0
        %v1450 = vmax.f32 %v1356, 0.0
        %v1451 = vmax.f32 %v1361, 0.0
        %v1452 = vmax.f32 %v1364, 0.0
        %v1453 = vmax.f32 %v1369, 0.0
        %v1454 = vmax.f32 %v1372, 0.0
        %v1455 = vmax.f32 %v1377, 0.0
        %v1456 = vmax.f32 %v1380, 0.0
        %v1457 = vmax.f32 %v1385, 0.0
        %v1458 = vmax.f32 %v1388, 0.0
        %v1459 = vmax.f32 %v1393, 0.0
        %v1460 = vmax.f32 %v1396, 0.0
        %v1461 = vmax.f32 %v1401, 0.0
        %v1462 = vmax.f32 %v1404, 0.0
        %v1463 = vmax.f32 %v1409, 0.0
        %v1464 = vmax.f32 %v1412, 0.0
        %v1465 = vmax.f32 %v1417, 0.0
        %v1466 = vmax.f32 %v1420, 0.0
        %v1467 = vmax.f32 %v1425, 0.0
        %v1468 = vmax.f32 %v1428, 0.0
        %v1469 = vmax.f32 %v1433, 0.0
        %v1470 = vmax.f32 %v1436, 0.0
        %v1471 = vld [vmem:[%s3] sm:$0x1]
        %v1473 = vlaneseq
        %v1474 = vshrl.u32 %v1473, 7
        %v1475 = vsub.s32 0, %v1474
        %v1476 = vrot.slane %v1471, %v1475
        %v1478 = vmul.f32 %v1439, %v1476
        %v1479 = vmul.f32 %v1440, %v1476
        %v1480 = vmul.f32 %v1441, %v1476
        %v1481 = vmul.f32 %v1442, %v1476
        %v1482 = vmul.f32 %v1443, %v1476
        %v1483 = vmul.f32 %v1444, %v1476
        %v1484 = vmul.f32 %v1445, %v1476
        %v1485 = vmul.f32 %v1446, %v1476
        %v1486 = vmul.f32 %v1447, %v1476
        %v1487 = vmul.f32 %v1448, %v1476
        %v1488 = vmul.f32 %v1449, %v1476
        %v1489 = vmul.f32 %v1450, %v1476
        %v1490 = vmul.f32 %v1451, %v1476
        %v1491 = vmul.f32 %v1452, %v1476
        %v1492 = vmul.f32 %v1453, %v1476
        %v1493 = vmul.f32 %v1454, %v1476
        %v1494 = vmul.f32 %v1455, %v1476
        %v1495 = vmul.f32 %v1456, %v1476
        %v1496 = vmul.f32 %v1457, %v1476
        %v1497 = vmul.f32 %v1458, %v1476
        %v1498 = vmul.f32 %v1459, %v1476
        %v1499 = vmul.f32 %v1460, %v1476
        %v1500 = vmul.f32 %v1461, %v1476
        %v1501 = vmul.f32 %v1462, %v1476
        %v1502 = vmul.f32 %v1463, %v1476
        %v1503 = vmul.f32 %v1464, %v1476
        %v1504 = vmul.f32 %v1465, %v1476
        %v1505 = vmul.f32 %v1466, %v1476
        %v1506 = vmul.f32 %v1467, %v1476
        %v1507 = vmul.f32 %v1468, %v1476
        %v1508 = vmul.f32 %v1469, %v1476
        %v1509 = vmul.f32 %v1470, %v1476
        %v1510 = vld [vmem:[%s4] sm:$0x1]
        %v1512 = vlaneseq
        %v1513 = vshrl.u32 %v1512, 7
        %v1514 = vsub.s32 0, %v1513
        %v1515 = vrot.slane %v1510, %v1514
        %v1517 = vadd.f32 %v1478, %v1515
        %v1518 = vadd.f32 %v1479, %v1515
        %v1519 = vadd.f32 %v1480, %v1515
        %v1520 = vadd.f32 %v1481, %v1515
        %v1521 = vadd.f32 %v1482, %v1515
        %v1522 = vadd.f32 %v1483, %v1515
        %v1523 = vadd.f32 %v1484, %v1515
        %v1524 = vadd.f32 %v1485, %v1515
        %v1525 = vadd.f32 %v1486, %v1515
        %v1526 = vadd.f32 %v1487, %v1515
        %v1527 = vadd.f32 %v1488, %v1515
        %v1528 = vadd.f32 %v1489, %v1515
        %v1529 = vadd.f32 %v1490, %v1515
        %v1530 = vadd.f32 %v1491, %v1515
        %v1531 = vadd.f32 %v1492, %v1515
        %v1532 = vadd.f32 %v1493, %v1515
        %v1533 = vadd.f32 %v1494, %v1515
        %v1534 = vadd.f32 %v1495, %v1515
        %v1535 = vadd.f32 %v1496, %v1515
        %v1536 = vadd.f32 %v1497, %v1515
        %v1537 = vadd.f32 %v1498, %v1515
        %v1538 = vadd.f32 %v1499, %v1515
        %v1539 = vadd.f32 %v1500, %v1515
        %v1540 = vadd.f32 %v1501, %v1515
        %v1541 = vadd.f32 %v1502, %v1515
        %v1542 = vadd.f32 %v1503, %v1515
        %v1543 = vadd.f32 %v1504, %v1515
        %v1544 = vadd.f32 %v1505, %v1515
        %v1545 = vadd.f32 %v1506, %v1515
        %v1546 = vadd.f32 %v1507, %v1515
        %v1547 = vadd.f32 %v1508, %v1515
        %v1548 = vadd.f32 %v1509, %v1515
        %1549 = vst [vmem:[%s217] sm:$0xff] %v1517
        %1550 = vst [vmem:[%s217 + $0x8] sm:$0xff] %v1518
        %1551 = vst [vmem:[%s217 + $0x10] sm:$0xff] %v1519
        %1552 = vst [vmem:[%s217 + $0x18] sm:$0xff] %v1520
        %1553 = vst [vmem:[%s217 + $0x20] sm:$0xff] %v1521
        %1554 = vst [vmem:[%s217 + $0x28] sm:$0xff] %v1522
        %1555 = vst [vmem:[%s217 + $0x30] sm:$0xff] %v1523
        %1556 = vst [vmem:[%s217 + $0x38] sm:$0xff] %v1524
        %1557 = vst [vmem:[%s217 + $0x40] sm:$0xff] %v1525
        %1558 = vst [vmem:[%s217 + $0x48] sm:$0xff] %v1526
        %1559 = vst [vmem:[%s217 + $0x50] sm:$0xff] %v1527
        %1560 = vst [vmem:[%s217 + $0x58] sm:$0xff] %v1528
        %1561 = vst [vmem:[%s217 + $0x60] sm:$0xff] %v1529
        %1562 = vst [vmem:[%s217 + $0x68] sm:$0xff] %v1530
        %1563 = vst [vmem:[%s217 + $0x70] sm:$0xff] %v1531
        %1564 = vst [vmem:[%s217 + $0x78] sm:$0xff] %v1532
        %1565 = vst [vmem:[%s217 + $0x80] sm:$0xff] %v1533
        %1566 = vst [vmem:[%s217 + $0x88] sm:$0xff] %v1534
        %1567 = vst [vmem:[%s217 + $0x90] sm:$0xff] %v1535
        %1568 = vst [vmem:[%s217 + $0x98] sm:$0xff] %v1536
        %1569 = vst [vmem:[%s217 + $0xa0] sm:$0xff] %v1537
        %1570 = vst [vmem:[%s217 + $0xa8] sm:$0xff] %v1538
        %1571 = vst [vmem:[%s217 + $0xb0] sm:$0xff] %v1539
        %1572 = vst [vmem:[%s217 + $0xb8] sm:$0xff] %v1540
        %1573 = vst [vmem:[%s217 + $0xc0] sm:$0xff] %v1541
        %1574 = vst [vmem:[%s217 + $0xc8] sm:$0xff] %v1542
        %1575 = vst [vmem:[%s217 + $0xd0] sm:$0xff] %v1543
        %1576 = vst [vmem:[%s217 + $0xd8] sm:$0xff] %v1544
        %1577 = vst [vmem:[%s217 + $0xe0] sm:$0xff] %v1545
        %1578 = vst [vmem:[%s217 + $0xe8] sm:$0xff] %v1546
        %1579 = vst [vmem:[%s217 + $0xf0] sm:$0xff] %v1547
        %1580 = vst [vmem:[%s217 + $0xf8] sm:$0xff] %v1548
        %s1581 = sand.u32 %s137, 1
        %s1582 = scalar_lea.sflag [#allocation3], %s1581
        %s1583 = sand.u32 %s137, 1
        %s1584 = smul.addr %s1583, 256
        %s1585 = scalar_lea.vmem [#allocation2], %s1584
        // Predicated region
        $region41: #{tpu_custom_call.1} parent=39 // pred_check
          %p1586 = pneg %p147
        $region42: #{tpu_custom_call.1} parent=39 // pred_check_branch
          %1588 = sbr.rel (%p1586) target = $region44
        $region43: #{tpu_custom_call.1} parent=39 // pred_region
          %s1590 = ssub.s32 4096, 4096
          %1591 = vsyncadd %s1582, %s1590
          %s1592 = smul.addr %s19, 32
          %s1593 = smul.addr %s1592, 128
          %s1594 = scalar_lea.hbm %s5, %s1593
          %s1595 = sshll.u32 %s1585, 4
          %s1596 = int_to_ptr.vmem [resolvable:$true] %s1595
          %1601 = dma.vmem_to_hbm [thread:$0]  %s1596, 4096, %s1594, %s1582, 128, 128, 8
        $region44: #{tpu_custom_call.1} parent=39 // pred_fallthru
          _
      $region40: #{tpu_custom_call.1} parent=5 // pred_fallthru
        _
      %p1602 = scmp.le.s32.totalorder 2, %s14
      // Predicated region
      $region45: #{tpu_custom_call.1} parent=5 // pred_check
        %p1603 = pneg %p1602
      $region46: #{tpu_custom_call.1} parent=5 // pred_check_branch
        %1605 = sbr.rel (%p1603) target = $region48
      $region47: #{tpu_custom_call.1} parent=5 // pred_region
        %s1606 = ssub.s32 %s14, 2
        // Predicated region
        $region49: #{tpu_custom_call.1} parent=47 // pred_check
          %p1607 = pneg %p153
        $region50: #{tpu_custom_call.1} parent=47 // pred_check_branch
          %1609 = sbr.rel (%p1607) target = $region52
        $region51: #{tpu_custom_call.1} parent=47 // pred_region
          %s1610 = sand.u32 %s138, 1
          %s1611 = scalar_lea.sflag [#allocation3], %s1610
          %s1612 = sand.u32 %s138, 1
          %s1613 = smul.addr %s1612, 256
          %s1614 = scalar_lea.vmem [#allocation2], %s1613
          %1615 = dma.done %s1611, 4096
        $region52: #{tpu_custom_call.1} parent=47 // pred_fallthru
          _
      $region48: #{tpu_custom_call.1} parent=5 // pred_fallthru
        _
    $region6: #{tpu_custom_call.1} parent=1 // loop_footer
      %s18 = sadd.s32 1, %s14
    $region7: #{tpu_custom_call.1} parent=1 // loop_footer_branch
      %13 = sbr.rel target = $region3
    $region8: #{tpu_custom_call.1} parent=1 // loop_exit
      _
    %1616 = vsyncpa [#allocation3], 1
    %s1617 = scalar_lea.sflag [#allocation3], 1
    %1618 = vsyncpa %s1617, 1

</llo_original>
